<compile_context>
chip_gen: v7x
topology: tpu7x:2x2x1
jax: 0.10.0
libtpu: 0.0.40
codegen_flags: <defaults>
</compile_context>

<pallas_src>
import jax
import jax.numpy as jnp
from jax.experimental import pallas as pl
from jax.experimental.pallas import tpu as pltpu

# Problem sizes (small, consistent with the module's forward).
B, CIN, CH = 2, 4, 32          # batch, input_dim, hidden_dim
H, W = 16, 16                  # spatial
KH, KW = 3, 3                  # kernel_size
CTOT = CIN + CH                # conv in-channels                (36)
PH, PW = KH // 2, KW // 2      # "same" padding
K = CTOT * KH * KW             # im2col contraction depth        (324)
K_PAD = 384                    # zero-padded K (multiple of 128)
HW = H * W                     # pixels per batch image          (256)
P = B * HW                     # total flattened pixel count     (512)
CG = 4 * CH                    # gate channels                   (128)


def _gates_in_bf16() -> bool:
    """bf16 EUP/VPU exists on v6e and newer; keep gate math f32 on v5e/older."""
    try:
        kind = jax.devices()[0].device_kind.lower()
    except Exception:
        return False
    return not any(t in kind for t in ("v2", "v3", "v4", "v5"))


_BF16_GATES = _gates_in_bf16()


def _make_kernel(bf16_gates: bool):
    gate_dt = jnp.bfloat16 if bf16_gates else jnp.float32

    def convlstm_kernel(w_ref, patches_ref, b_ref, c_ref, h_out_ref, c_out_ref):
        # w_ref       : (CG, K_PAD)     bf16  flattened conv weight (zero-padded K)
        # patches_ref : (K_PAD, HW)     bf16  im2col of concat([x, h]) for this batch
        # b_ref       : (CG, 1)         f32   conv bias
        # c_ref       : (1, CH, HW)     f32   current cell state for this batch
        # h_out_ref   : (1, CH, HW)     bf16
        # c_out_ref   : (1, CH, HW)     f32
        gates = jnp.dot(w_ref[...], patches_ref[...],
                        preferred_element_type=jnp.float32)        # (CG, HW) on MXU
        gates = (gates + b_ref[...]).astype(gate_dt)               # lane-bcast bias add

        ifo = jax.nn.sigmoid(gates[:3 * CH, :])                    # (96, HW) one EUP span
        g = jnp.tanh(gates[3 * CH:, :]).astype(jnp.float32)        # (32, HW)

        i = ifo[0 * CH:1 * CH].astype(jnp.float32)                 # 8-aligned sublane slices
        f = ifo[1 * CH:2 * CH].astype(jnp.float32)
        o = ifo[2 * CH:3 * CH].astype(jnp.float32)

        c_next = f * c_ref[0] + i * g                              # f32 state FMA
        tanh_c = jnp.tanh(c_next.astype(gate_dt)).astype(jnp.float32)
        h_next = o * tanh_c

        c_out_ref[0] = c_next
        h_out_ref[0] = h_next.astype(h_out_ref.dtype)

    return convlstm_kernel


@jax.jit
def convlstm_cell(x, h_cur, c_cur, w_oihw, bias):
    # x: (B,CIN,H,W)  h_cur,c_cur: (B,CH,H,W)  w_oihw: (CG,CTOT,KH,KW)  bias: (CG,)
    # ---- wrapper-side im2col, all in bf16, transpose-before-tap ----
    comb = jnp.concatenate([x.astype(jnp.bfloat16),
                            h_cur.astype(jnp.bfloat16)], axis=1)    # (B,CTOT,H,W) bf16
    comb = comb.transpose(1, 0, 2, 3)                               # (CTOT,B,H,W) small transpose
    comb_pad = jnp.pad(comb, ((0, 0), (0, 0), (PH, PH), (PW, PW)))  # (CTOT,B,H+2,W+2)
    taps = [comb_pad[:, :, dy:dy + H, dx:dx + W]
            for dy in range(KH) for dx in range(KW)]                # 9 x (CTOT,B,H,W)
    patches = jnp.stack(taps, axis=1).reshape(K, P)                 # k=ci*9+dy*3+dx, p=b*HW+y*W+x
    patches = jnp.pad(patches, ((0, K_PAD - K), (0, 0)))            # (K_PAD, P) bf16

    w_mat = jnp.pad(w_oihw.reshape(CG, K).astype(jnp.bfloat16),
                    ((0, 0), (0, K_PAD - K)))                       # (CG, K_PAD) same k ordering
    bias2d = bias.reshape(CG, 1).astype(jnp.float32)
    c_flat = c_cur.reshape(B, CH, HW).astype(jnp.float32)           # per-batch layout, no transpose

    cost = pl.CostEstimate(
        flops=2 * CG * K_PAD * P,
        transcendentals=5 * CH * P,                                 # advisory
        bytes_accessed=(CG * K_PAD + K_PAD * P) * 2
                       + (CG + B * CH * HW) * 4
                       + B * CH * HW * 2 + B * CH * HW * 4,
    )

    h_flat, c_next_flat = pl.pallas_call(
        _make_kernel(_BF16_GATES),
        out_shape=(jax.ShapeDtypeStruct((B, CH, HW), jnp.bfloat16),
                   jax.ShapeDtypeStruct((B, CH, HW), jnp.float32)),
        grid_spec=pltpu.PrefetchScalarGridSpec(
            num_scalar_prefetch=0,
            grid=(B,),                                   # one batch image per grid block
            in_specs=(
                pl.BlockSpec((CG, K_PAD), lambda n: (0, 0)),   # weight, resident
                pl.BlockSpec((K_PAD, HW), lambda n: (0, n)),   # per-batch pixel slab
                pl.BlockSpec((CG, 1), lambda n: (0, 0)),       # bias, resident
                pl.BlockSpec((1, CH, HW), lambda n: (n, 0, 0)),
            ),
            out_specs=(
                pl.BlockSpec((1, CH, HW), lambda n: (n, 0, 0)),
                pl.BlockSpec((1, CH, HW), lambda n: (n, 0, 0)),
            ),
        ),
        compiler_params=pltpu.CompilerParams(
            dimension_semantics=("parallel",)),          # 2 TCs on v7x; pipelined elsewhere
        cost_estimate=cost,
    )(w_mat, patches, bias2d, c_flat)

    # un-flatten back to NCHW (pure reshapes, no transposes)
    h_next = h_flat.reshape(B, CH, H, W)       # bf16 (feeds next step's bf16 im2col)
    c_next = c_next_flat.reshape(B, CH, H, W)  # f32
    return h_next, c_next


def convlstm_ref(x, h_cur, c_cur, w_oihw, bias):
    """Pure-JAX f32 reference mirroring the PyTorch forward (NCHW)."""
    combined = jnp.concatenate([x, h_cur], axis=1)
    conv = jax.lax.conv_general_dilated(
        combined, w_oihw, window_strides=(1, 1),
        padding=((PH, PH), (PW, PW)),
        dimension_numbers=("NCHW", "OIHW", "NCHW")) + bias.reshape(1, CG, 1, 1)
    cc_i, cc_f, cc_o, cc_g = jnp.split(conv, 4, axis=1)
    i = jax.nn.sigmoid(cc_i)
    f = jax.nn.sigmoid(cc_f)
    o = jax.nn.sigmoid(cc_o)
    g = jnp.tanh(cc_g)
    c_next = f * c_cur + i * g
    h_next = o * jnp.tanh(c_next)
    return h_next, c_next


if __name__ == "__main__":
    key = jax.random.PRNGKey(0)
    kx, kh, kc, kw, kb = jax.random.split(key, 5)

    x = jax.random.normal(kx, (B, CIN, H, W), jnp.float32)
    h_cur = jax.random.normal(kh, (B, CH, H, W), jnp.float32)
    c_cur = jax.random.normal(kc, (B, CH, H, W), jnp.float32)
    # Deterministic synthetic Conv2d parameters (OIHW, like PyTorch), fan-in-ish scale.
    w_oihw = jax.random.normal(kw, (CG, CTOT, KH, KW), jnp.float32) * 0.05
    bias = jax.random.normal(kb, (CG,), jnp.float32) * 0.05

    h_next, c_next = convlstm_cell(x, h_cur, c_cur, w_oihw, bias)
    jax.block_until_ready((h_next, c_next))

    h_ref, c_ref = convlstm_ref(x, h_cur, c_cur, w_oihw, bias)
    # Tolerance accounts for bf16 matmul operands, bf16 gate nonlinearities
    # (v6e/v7x) and the bf16 h output; state FMA and accumulation stay f32.
    assert jnp.allclose(h_next.astype(jnp.float32), h_ref, atol=5e-2, rtol=5e-2), "h_next mismatch"
    assert jnp.allclose(c_next, c_ref, atol=5e-2, rtol=5e-2), "c_next mismatch"

    print("KERNEL_OK")
</pallas_src>

<mosaic_0001>
module attributes {stable_mosaic.version = 11 : i64} {
  func.func @convlstm_kernel(%arg0: i32, %arg1: memref<128x384xbf16, #tpu.memory_space<vmem>>, %arg2: memref<384x256xbf16, #tpu.memory_space<vmem>>, %arg3: memref<128x1xf32, #tpu.memory_space<vmem>>, %arg4: memref<1x32x256xf32, #tpu.memory_space<vmem>>, %arg5: memref<1x32x256xbf16, #tpu.memory_space<vmem>>, %arg6: memref<1x32x256xf32, #tpu.memory_space<vmem>>) attributes {dimension_semantics = [#tpu.dimension_semantics<parallel>], iteration_bounds = array<i64: 2>, scalar_prefetch = 0 : i64, scratch_operands = 0 : i64, tpu.core_type = #tpu.core_type<tc>, window_params = [{pipeline_mode = #tpu.pipeline_mode<synchronous>, transform_indices = @transform_0, window_bounds = array<i64: 128, 384>}, {transform_indices = @transform_1, window_bounds = array<i64: 384, 256>}, {pipeline_mode = #tpu.pipeline_mode<synchronous>, transform_indices = @transform_2, window_bounds = array<i64: 128, 1>}, {transform_indices = @transform_3, window_bounds = array<i64: 1, 32, 256>}, {transform_indices = @transform_4, window_bounds = array<i64: 1, 32, 256>}, {transform_indices = @transform_5, window_bounds = array<i64: 1, 32, 256>}]} {
    %c0 = arith.constant 0 : index
    %c0_0 = arith.constant 0 : index
    %0 = vector.load %arg1[%c0, %c0_0] : memref<128x384xbf16, #tpu.memory_space<vmem>>, vector<128x384xbf16>
    %c0_1 = arith.constant 0 : index
    %c0_2 = arith.constant 0 : index
    %1 = vector.load %arg2[%c0_1, %c0_2] : memref<384x256xbf16, #tpu.memory_space<vmem>>, vector<384x256xbf16>
    %cst = arith.constant dense<0.000000e+00> : vector<128x256xf32>
    %2 = tpu.matmul %0, %1, %cst {dimension_numbers = #tpu.dot_dimension_numbers<[1], [0], [0], [1], [0, 0, 1, 1], [], []>} : vector<128x384xbf16>, vector<384x256xbf16>, vector<128x256xf32> -> vector<128x256xf32>
    %c0_3 = arith.constant 0 : index
    %c0_4 = arith.constant 0 : index
    %3 = vector.load %arg3[%c0_3, %c0_4] : memref<128x1xf32, #tpu.memory_space<vmem>>, vector<128x1xf32>
    %4 = vector.broadcast %3 : vector<128x1xf32> to vector<128x256xf32>
    %5 = arith.addf %2, %4 : vector<128x256xf32>
    %6 = arith.truncf %5 : vector<128x256xf32> to vector<128x256xbf16>
    %7 = vector.extract_strided_slice %6 {offsets = [0, 0], sizes = [96, 256], strides = [1, 1]} : vector<128x256xbf16> to vector<96x256xbf16>
    %8 = arith.negf %7 : vector<96x256xbf16>
    %9 = math.exp %8 : vector<96x256xbf16>
    %cst_5 = arith.constant 1.000000e+00 : bf16
    %10 = vector.broadcast %cst_5 : bf16 to vector<96x256xbf16>
    %11 = arith.addf %10, %9 : vector<96x256xbf16>
    %12 = arith.divf %10, %11 : vector<96x256xbf16>
    %13 = vector.extract_strided_slice %6 {offsets = [96, 0], sizes = [32, 256], strides = [1, 1]} : vector<128x256xbf16> to vector<32x256xbf16>
    %14 = math.tanh %13 : vector<32x256xbf16>
    %15 = arith.extf %14 : vector<32x256xbf16> to vector<32x256xf32>
    %16 = vector.extract_strided_slice %12 {offsets = [0, 0], sizes = [32, 256], strides = [1, 1]} : vector<96x256xbf16> to vector<32x256xbf16>
    %17 = arith.extf %16 : vector<32x256xbf16> to vector<32x256xf32>
    %18 = vector.extract_strided_slice %12 {offsets = [32, 0], sizes = [32, 256], strides = [1, 1]} : vector<96x256xbf16> to vector<32x256xbf16>
    %19 = arith.extf %18 : vector<32x256xbf16> to vector<32x256xf32>
    %20 = vector.extract_strided_slice %12 {offsets = [64, 0], sizes = [32, 256], strides = [1, 1]} : vector<96x256xbf16> to vector<32x256xbf16>
    %21 = arith.extf %20 : vector<32x256xbf16> to vector<32x256xf32>
    %c0_6 = arith.constant 0 : index
    %c0_7 = arith.constant 0 : index
    %c0_8 = arith.constant 0 : index
    %22 = vector.load %arg4[%c0_6, %c0_7, %c0_8] : memref<1x32x256xf32, #tpu.memory_space<vmem>>, vector<1x32x256xf32>
    %23 = vector.shape_cast %22 : vector<1x32x256xf32> to vector<32x256xf32>
    %24 = arith.mulf %19, %23 : vector<32x256xf32>
    %25 = arith.mulf %17, %15 : vector<32x256xf32>
    %26 = arith.addf %24, %25 : vector<32x256xf32>
    %27 = arith.truncf %26 : vector<32x256xf32> to vector<32x256xbf16>
    %28 = math.tanh %27 : vector<32x256xbf16>
    %29 = arith.extf %28 : vector<32x256xbf16> to vector<32x256xf32>
    %30 = arith.mulf %21, %29 : vector<32x256xf32>
    %c0_9 = arith.constant 0 : index
    %c0_10 = arith.constant 0 : index
    %c0_11 = arith.constant 0 : index
    %31 = vector.load %arg6[%c0_9, %c0_10, %c0_11] : memref<1x32x256xf32, #tpu.memory_space<vmem>>, vector<1x32x256xf32>
    %32 = vector.shape_cast %31 : vector<1x32x256xf32> to vector<32x256xf32>
    %33 = vector.shape_cast %26 : vector<32x256xf32> to vector<1x32x256xf32>
    tpu.vector_store %arg6[%c0_9, %c0_10, %c0_11], %33 {strides = array<i32>} : memref<1x32x256xf32, #tpu.memory_space<vmem>>, vector<1x32x256xf32>,
    %34 = arith.truncf %30 : vector<32x256xf32> to vector<32x256xbf16>
    %c0_12 = arith.constant 0 : index
    %c0_13 = arith.constant 0 : index
    %c0_14 = arith.constant 0 : index
    %35 = vector.load %arg5[%c0_12, %c0_13, %c0_14] : memref<1x32x256xbf16, #tpu.memory_space<vmem>>, vector<1x32x256xbf16>
    %36 = vector.shape_cast %35 : vector<1x32x256xbf16> to vector<32x256xbf16>
    %37 = vector.shape_cast %34 : vector<32x256xbf16> to vector<1x32x256xbf16>
    tpu.vector_store %arg5[%c0_12, %c0_13, %c0_14], %37 {strides = array<i32>} : memref<1x32x256xbf16, #tpu.memory_space<vmem>>, vector<1x32x256xbf16>,
    return
  }
  func.func @transform_0(%arg0: i32) -> (i32, i32) {
    %c0_i32 = arith.constant 0 : i32
    %c0_i32_0 = arith.constant 0 : i32
    %c0_i32_1 = arith.constant 0 : i32
    return %c0_i32, %c0_i32_0 : i32, i32
  }
  func.func @transform_1(%arg0: i32) -> (i32, i32) {
    %c0_i32 = arith.constant 0 : i32
    %c0_i32_0 = arith.constant 0 : i32
    return %c0_i32, %arg0 : i32, i32
  }
  func.func @transform_2(%arg0: i32) -> (i32, i32) {
    %c0_i32 = arith.constant 0 : i32
    %c0_i32_0 = arith.constant 0 : i32
    %c0_i32_1 = arith.constant 0 : i32
    return %c0_i32, %c0_i32_0 : i32, i32
  }
  func.func @transform_3(%arg0: i32) -> (i32, i32, i32) {
    %c0_i32 = arith.constant 0 : i32
    %c0_i32_0 = arith.constant 0 : i32
    %c0_i32_1 = arith.constant 0 : i32
    return %arg0, %c0_i32, %c0_i32_0 : i32, i32, i32
  }
  func.func @transform_4(%arg0: i32) -> (i32, i32, i32) {
    %c0_i32 = arith.constant 0 : i32
    %c0_i32_0 = arith.constant 0 : i32
    %c0_i32_1 = arith.constant 0 : i32
    return %arg0, %c0_i32, %c0_i32_0 : i32, i32, i32
  }
  func.func @transform_5(%arg0: i32) -> (i32, i32, i32) {
    %c0_i32 = arith.constant 0 : i32
    %c0_i32_0 = arith.constant 0 : i32
    %c0_i32_1 = arith.constant 0 : i32
    return %arg0, %c0_i32, %c0_i32_0 : i32, i32, i32
  }
}

</mosaic_0001>

<llo_original>
// kernel: convlstm_cell.1
$region0: #{convlstm_cell.1}
  #allocation0 [shape = 'u32[]', space=smem, size = 0x4, offset = 0x4, fixed_abs, tag = 'smem constant byte address 0x4 - core index']
  #allocation1 [shape = 'u32[144,128]{1,0:T(1,128)}', space=vmem, size = 0x12000, scoped, tag = 'internal scratch']
  %s0 = inlined_call_operand.vmem [shape: bf16[128,384], index: 0, kind: input, shape index: {}]
  %s1 = inlined_call_operand.vmem [shape: bf16[384,512], index: 1, kind: input, shape index: {}]
  %s2 = inlined_call_operand.vmem [shape: f32[128,1], index: 2, kind: input, shape index: {}]
  %s3 = inlined_call_operand.vmem [shape: f32[2,32,256], index: 3, kind: input, shape index: {}]
  %s4 = inlined_call_operand.vmem [shape: bf16[2,32,256], index: 4, kind: output, shape index: {0}]
  %s5 = inlined_call_operand.vmem [shape: f32[2,32,256], index: 5, kind: output, shape index: {1}]
  %6 = xla_tuple %s4, %s5
  %s7 = sld [smem:[#allocation0]]
  $region95: #{convlstm_cell.1} parent=0
    _
  %s9 = ssub.s32 1, %s7
  %s10 = scalar_select 0, %s9, %s7
  $region1: #{convlstm_cell.1} parent=0
    #allocation2 [shape = 'u8[393216]{0}', space=vmem, size = 0x60000, scoped, tag = 'input window, operand 1']
    loop: start=0, step=1, limit=4
    $region2: #{convlstm_cell.1} parent=1 // loop_pre_header
      _
    $region3: #{convlstm_cell.1} parent=1 // loop_header
      %s12 = sphi 0, %s16
      %p13 = scmp.ge.s32.totalorder %s12, 4
      %s20 = sphi 0, %s20
      %s22 = sphi 0, %s20
      %s23 = sphi 0, %s22
      %s37 = sphi 0, %s23
      %s43 = sphi 0, %s45
      %s46 = sphi 0, %s43
      %s47 = sphi 0, %s46
      %s63 = sphi 0, %s47
      %s67 = sphi 0, %s67
      %s69 = sphi 0, %s67
      %s70 = sphi 0, %s69
      %s84 = sphi 0, %s70
      %s90 = sphi 0, %s92
      %s93 = sphi 0, %s90
      %s94 = sphi 0, %s93
      %s110 = sphi 0, %s94
      %s116 = sphi 0, %s118
      %s119 = sphi 0, %s116
      %s120 = sphi 0, %s119
      %s136 = sphi 0, %s120
      %s142 = sphi 0, %s144
      %s145 = sphi 0, %s142
      %s146 = sphi 0, %s145
      %s162 = sphi 0, %s146
    $region4: #{convlstm_cell.1} parent=1 // loop_header_branch
      %15 = sbr.rel (%p13) target = $region8
    $region5: #{convlstm_cell.1} parent=1 // loop_body
      %s17 = ssub.s32 %s12, 1
      %s18 = ssub.s32 %s12, 2
      %s19 = sadd.s32 %s12, 1
      %s21 = sadd.s32 %s20, 1
      %p24 = scmp.eq.s32.totalorder %s12, 1
      %p25 = scmp.ne.s32.totalorder %s20, %s22
      %p26 = scmp.eq.s32.totalorder %s12, 0
      %p27 = por %p25, %p26
      %p28 = scmp.ne.s32.totalorder %s20, %s22
      %p29 = scmp.eq.s32.totalorder %s17, 1
      %p30 = por %p28, %p29
      %p31 = scmp.ne.s32.totalorder %s22, %s23
      %p32 = scmp.eq.s32.totalorder %s17, 0
      %p33 = por %p31, %p32
      %p34 = scmp.ne.s32.totalorder %s22, %s23
      %p35 = scmp.eq.s32.totalorder %s18, 1
      %p36 = por %p34, %p35
      %p38 = scmp.ne.s32.totalorder %s23, %s37
      %p39 = scmp.eq.s32.totalorder %s18, 0
      %p40 = por %p38, %p39
      %s41 = ssub.s32 %s12, %s19
      %p42 = scmp.eq.s32.totalorder %s41, 0
      %s44 = sadd.s32 %s43, 1
      %s45 = scalar_select %p42, %s43, %s44
      %p48 = pneg %p42
      %p49 = scmp.eq.s32.totalorder %s12, 1
      %p50 = por %p48, %p49
      %p51 = scmp.ne.s32.totalorder %s43, %s46
      %p52 = scmp.eq.s32.totalorder %s12, 0
      %p53 = por %p51, %p52
      %p54 = scmp.ne.s32.totalorder %s43, %s46
      %p55 = scmp.eq.s32.totalorder %s17, 1
      %p56 = por %p54, %p55
      %p57 = scmp.ne.s32.totalorder %s46, %s47
      %p58 = scmp.eq.s32.totalorder %s17, 0
      %p59 = por %p57, %p58
      %p60 = scmp.ne.s32.totalorder %s46, %s47
      %p61 = scmp.eq.s32.totalorder %s18, 1
      %p62 = por %p60, %p61
      %p64 = scmp.ne.s32.totalorder %s47, %s63
      %p65 = scmp.eq.s32.totalorder %s18, 0
      %p66 = por %p64, %p65
      %s68 = sadd.s32 %s67, 1
      %p71 = scmp.eq.s32.totalorder %s12, 1
      %p72 = scmp.ne.s32.totalorder %s67, %s69
      %p73 = scmp.eq.s32.totalorder %s12, 0
      %p74 = por %p72, %p73
      %p75 = scmp.ne.s32.totalorder %s67, %s69
      %p76 = scmp.eq.s32.totalorder %s17, 1
      %p77 = por %p75, %p76
      %p78 = scmp.ne.s32.totalorder %s69, %s70
      %p79 = scmp.eq.s32.totalorder %s17, 0
      %p80 = por %p78, %p79
      %p81 = scmp.ne.s32.totalorder %s69, %s70
      %p82 = scmp.eq.s32.totalorder %s18, 1
      %p83 = por %p81, %p82
      %p85 = scmp.ne.s32.totalorder %s70, %s84
      %p86 = scmp.eq.s32.totalorder %s18, 0
      %p87 = por %p85, %p86
      %s88 = ssub.s32 %s12, %s19
      %p89 = scmp.eq.s32.totalorder %s88, 0
      %s91 = sadd.s32 %s90, 1
      %s92 = scalar_select %p89, %s90, %s91
      %p95 = pneg %p89
      %p96 = scmp.eq.s32.totalorder %s12, 1
      %p97 = por %p95, %p96
      %p98 = scmp.ne.s32.totalorder %s90, %s93
      %p99 = scmp.eq.s32.totalorder %s12, 0
      %p100 = por %p98, %p99
      %p101 = scmp.ne.s32.totalorder %s90, %s93
      %p102 = scmp.eq.s32.totalorder %s17, 1
      %p103 = por %p101, %p102
      %p104 = scmp.ne.s32.totalorder %s93, %s94
      %p105 = scmp.eq.s32.totalorder %s17, 0
      %p106 = por %p104, %p105
      %p107 = scmp.ne.s32.totalorder %s93, %s94
      %p108 = scmp.eq.s32.totalorder %s18, 1
      %p109 = por %p107, %p108
      %p111 = scmp.ne.s32.totalorder %s94, %s110
      %p112 = scmp.eq.s32.totalorder %s18, 0
      %p113 = por %p111, %p112
      %s114 = ssub.s32 %s12, %s19
      %p115 = scmp.eq.s32.totalorder %s114, 0
      %s117 = sadd.s32 %s116, 1
      %s118 = scalar_select %p115, %s116, %s117
      %p121 = pneg %p115
      %p122 = scmp.eq.s32.totalorder %s12, 1
      %p123 = por %p121, %p122
      %p124 = scmp.ne.s32.totalorder %s116, %s119
      %p125 = scmp.eq.s32.totalorder %s12, 0
      %p126 = por %p124, %p125
      %p127 = scmp.ne.s32.totalorder %s116, %s119
      %p128 = scmp.eq.s32.totalorder %s17, 1
      %p129 = por %p127, %p128
      %p130 = scmp.ne.s32.totalorder %s119, %s120
      %p131 = scmp.eq.s32.totalorder %s17, 0
      %p132 = por %p130, %p131
      %p133 = scmp.ne.s32.totalorder %s119, %s120
      %p134 = scmp.eq.s32.totalorder %s18, 1
      %p135 = por %p133, %p134
      %p137 = scmp.ne.s32.totalorder %s120, %s136
      %p138 = scmp.eq.s32.totalorder %s18, 0
      %p139 = por %p137, %p138
      %s140 = ssub.s32 %s12, %s19
      %p141 = scmp.eq.s32.totalorder %s140, 0
      %s143 = sadd.s32 %s142, 1
      %s144 = scalar_select %p141, %s142, %s143
      %p147 = pneg %p141
      %p148 = scmp.eq.s32.totalorder %s12, 1
      %p149 = por %p147, %p148
      %p150 = scmp.ne.s32.totalorder %s142, %s145
      %p151 = scmp.eq.s32.totalorder %s12, 0
      %p152 = por %p150, %p151
      %p153 = scmp.ne.s32.totalorder %s142, %s145
      %p154 = scmp.eq.s32.totalorder %s17, 1
      %p155 = por %p153, %p154
      %p156 = scmp.ne.s32.totalorder %s145, %s146
      %p157 = scmp.eq.s32.totalorder %s17, 0
      %p158 = por %p156, %p157
      %p159 = scmp.ne.s32.totalorder %s145, %s146
      %p160 = scmp.eq.s32.totalorder %s18, 1
      %p161 = por %p159, %p160
      %p163 = scmp.ne.s32.totalorder %s146, %s162
      %p164 = scmp.eq.s32.totalorder %s18, 0
      %p165 = por %p163, %p164
      %p166 = scmp.le.s32.totalorder 1, %s12
      %p167 = scmp.lt.s32.totalorder %s12, 3
      %p168 = pnand %p166, %p167
      %p169 = pneg %p168
      // Predicated region
      $region9: #{convlstm_cell.1} parent=5 // pred_check
        _
      $region10: #{convlstm_cell.1} parent=5 // pred_check_branch
        %171 = sbr.rel (%p168) target = $region12
      $region11: #{convlstm_cell.1} parent=5 // pred_region
        %s172 = ssub.s32 %s12, 1
        // Predicated region
        $region13: #{convlstm_cell.1} parent=11 // pred_check
          %p173 = pneg %p33
        $region14: #{convlstm_cell.1} parent=11 // pred_check_branch
          %175 = sbr.rel (%p173) target = $region16
        $region15: #{convlstm_cell.1} parent=11 // pred_region
          _
        $region16: #{convlstm_cell.1} parent=11 // pred_fallthru
          _
        // Predicated region
        $region17: #{convlstm_cell.1} parent=11 // pred_check
          %p176 = pneg %p80
        $region18: #{convlstm_cell.1} parent=11 // pred_check_branch
          %178 = sbr.rel (%p176) target = $region20
        $region19: #{convlstm_cell.1} parent=11 // pred_region
          _
        $region20: #{convlstm_cell.1} parent=11 // pred_fallthru
          _
      $region12: #{convlstm_cell.1} parent=5 // pred_fallthru
        _
      %p179 = scmp.lt.s32.totalorder %s12, 2
      // Predicated region
      $region21: #{convlstm_cell.1} parent=5 // pred_check
        %p180 = pneg %p179
      $region22: #{convlstm_cell.1} parent=5 // pred_check_branch
        %182 = sbr.rel (%p180) target = $region24
      $region23: #{convlstm_cell.1} parent=5 // pred_region
        // Predicated region
        $region25: #{convlstm_cell.1} parent=23 // pred_check
          %p183 = pneg %p53
        $region26: #{convlstm_cell.1} parent=23 // pred_check_branch
          %185 = sbr.rel (%p183) target = $region28
        $region27: #{convlstm_cell.1} parent=23 // pred_region
          %s186 = sand.u32 %s43, 1
          %s187 = sand.u32 %s43, 1
          %s188 = smul.addr %s187, 384
          %s189 = scalar_lea.vmem [#allocation2], %s188
          %s190 = smul.u32 2, %s12
          %s191 = smul.addr %s190, 4
          %s192 = scalar_lea.vmem %s1, %s191
          // Predicated region
          $region29: #{convlstm_cell.1} parent=27 // pred_check
            _
          $region30: #{convlstm_cell.1} parent=27 // pred_check_branch
            %194 = sbr.rel (0) target = $region32
          $region31: #{convlstm_cell.1} parent=27 // pred_region
            // Predicated region
            $region33: #{convlstm_cell.1} parent=31 // pred_check
              _
            $region34: #{convlstm_cell.1} parent=31 // pred_check_branch
              %196 = sbr.rel (0) target = $region36
            $region35: #{convlstm_cell.1} parent=31 // pred_region
              // Predicated region
              $region48: #{convlstm_cell.1} parent=35 // pred_check
                _
              $region49: #{convlstm_cell.1} parent=35 // pred_check_branch
                %305 = sbr.rel (0) target = $region51
              $region50: #{convlstm_cell.1} parent=35 // pred_region
                loop: start=0, step=1, limit=1
                $region52: #{convlstm_cell.1} parent=50 // loop_pre_header
                  _
                $region53: #{convlstm_cell.1} parent=50 // loop_header
                  %s307 = sphi 0, %s311
                  %p308 = scmp.ge.s32.totalorder %s307, 1
                  %s312 = sphi %s192, %s192
                  %s313 = sphi %s189, %s189
                $region54: #{convlstm_cell.1} parent=50 // loop_header_branch
                  %310 = sbr.rel (%p308) target = $region58
                $region55: #{convlstm_cell.1} parent=50 // loop_body
                  %v314 = vld [vmem:[%s312] sm:$0xff]
                  %315 = vst [vmem:[%s313] sm:$0xff] %v314
                  %v316 = vld [vmem:[%s312 + $0x10] sm:$0xff]
                  %317 = vst [vmem:[%s313 + $0x8] sm:$0xff] %v316
                  %v318 = vld [vmem:[%s312 + $0x20] sm:$0xff]
                  %319 = vst [vmem:[%s313 + $0x10] sm:$0xff] %v318
                  %v320 = vld [vmem:[%s312 + $0x30] sm:$0xff]
                  %321 = vst [vmem:[%s313 + $0x18] sm:$0xff] %v320
                  %v322 = vld [vmem:[%s312 + $0x40] sm:$0xff]
                  %323 = vst [vmem:[%s313 + $0x20] sm:$0xff] %v322
                  %v324 = vld [vmem:[%s312 + $0x50] sm:$0xff]
                  %325 = vst [vmem:[%s313 + $0x28] sm:$0xff] %v324
                  %v326 = vld [vmem:[%s312 + $0x60] sm:$0xff]
                  %327 = vst [vmem:[%s313 + $0x30] sm:$0xff] %v326
                  %v328 = vld [vmem:[%s312 + $0x70] sm:$0xff]
                  %329 = vst [vmem:[%s313 + $0x38] sm:$0xff] %v328
                  %v330 = vld [vmem:[%s312 + $0x80] sm:$0xff]
                  %331 = vst [vmem:[%s313 + $0x40] sm:$0xff] %v330
                  %v332 = vld [vmem:[%s312 + $0x90] sm:$0xff]
                  %333 = vst [vmem:[%s313 + $0x48] sm:$0xff] %v332
                  %v334 = vld [vmem:[%s312 + $0xa0] sm:$0xff]
                  %335 = vst [vmem:[%s313 + $0x50] sm:$0xff] %v334
                  %v336 = vld [vmem:[%s312 + $0xb0] sm:$0xff]
                  %337 = vst [vmem:[%s313 + $0x58] sm:$0xff] %v336
                  %v338 = vld [vmem:[%s312 + $0xc0] sm:$0xff]
                  %339 = vst [vmem:[%s313 + $0x60] sm:$0xff] %v338
                  %v340 = vld [vmem:[%s312 + $0xd0] sm:$0xff]
                  %341 = vst [vmem:[%s313 + $0x68] sm:$0xff] %v340
                  %v342 = vld [vmem:[%s312 + $0xe0] sm:$0xff]
                  %343 = vst [vmem:[%s313 + $0x70] sm:$0xff] %v342
                  %v344 = vld [vmem:[%s312 + $0xf0] sm:$0xff]
                  %345 = vst [vmem:[%s313 + $0x78] sm:$0xff] %v344
                  %v346 = vld [vmem:[%s312 + $0x100] sm:$0xff]
                  %347 = vst [vmem:[%s313 + $0x80] sm:$0xff] %v346
                  %v348 = vld [vmem:[%s312 + $0x110] sm:$0xff]
                  %349 = vst [vmem:[%s313 + $0x88] sm:$0xff] %v348
                  %v350 = vld [vmem:[%s312 + $0x120] sm:$0xff]
                  %351 = vst [vmem:[%s313 + $0x90] sm:$0xff] %v350
                  %v352 = vld [vmem:[%s312 + $0x130] sm:$0xff]
                  %353 = vst [vmem:[%s313 + $0x98] sm:$0xff] %v352
                  %v354 = vld [vmem:[%s312 + $0x140] sm:$0xff]
                  %355 = vst [vmem:[%s313 + $0xa0] sm:$0xff] %v354
                  %v356 = vld [vmem:[%s312 + $0x150] sm:$0xff]
                  %357 = vst [vmem:[%s313 + $0xa8] sm:$0xff] %v356
                  %v358 = vld [vmem:[%s312 + $0x160] sm:$0xff]
                  %359 = vst [vmem:[%s313 + $0xb0] sm:$0xff] %v358
                  %v360 = vld [vmem:[%s312 + $0x170] sm:$0xff]
                  %361 = vst [vmem:[%s313 + $0xb8] sm:$0xff] %v360
                  %v362 = vld [vmem:[%s312 + $0x180] sm:$0xff]
                  %363 = vst [vmem:[%s313 + $0xc0] sm:$0xff] %v362
                  %v364 = vld [vmem:[%s312 + $0x190] sm:$0xff]
                  %365 = vst [vmem:[%s313 + $0xc8] sm:$0xff] %v364
                  %v366 = vld [vmem:[%s312 + $0x1a0] sm:$0xff]
                  %367 = vst [vmem:[%s313 + $0xd0] sm:$0xff] %v366
                  %v368 = vld [vmem:[%s312 + $0x1b0] sm:$0xff]
                  %369 = vst [vmem:[%s313 + $0xd8] sm:$0xff] %v368
                  %v370 = vld [vmem:[%s312 + $0x1c0] sm:$0xff]
                  %371 = vst [vmem:[%s313 + $0xe0] sm:$0xff] %v370
                  %v372 = vld [vmem:[%s312 + $0x1d0] sm:$0xff]
                  %373 = vst [vmem:[%s313 + $0xe8] sm:$0xff] %v372
                  %v374 = vld [vmem:[%s312 + $0x1e0] sm:$0xff]
                  %375 = vst [vmem:[%s313 + $0xf0] sm:$0xff] %v374
                  %v376 = vld [vmem:[%s312 + $0x1f0] sm:$0xff]
                  %377 = vst [vmem:[%s313 + $0xf8] sm:$0xff] %v376
                  %v378 = vld [vmem:[%s312 + $0x200] sm:$0xff]
                  %379 = vst [vmem:[%s313 + $0x100] sm:$0xff] %v378
                  %v380 = vld [vmem:[%s312 + $0x210] sm:$0xff]
                  %381 = vst [vmem:[%s313 + $0x108] sm:$0xff] %v380
                  %v382 = vld [vmem:[%s312 + $0x220] sm:$0xff]
                  %383 = vst [vmem:[%s313 + $0x110] sm:$0xff] %v382
                  %v384 = vld [vmem:[%s312 + $0x230] sm:$0xff]
                  %385 = vst [vmem:[%s313 + $0x118] sm:$0xff] %v384
                  %v386 = vld [vmem:[%s312 + $0x240] sm:$0xff]
                  %387 = vst [vmem:[%s313 + $0x120] sm:$0xff] %v386
                  %v388 = vld [vmem:[%s312 + $0x250] sm:$0xff]
                  %389 = vst [vmem:[%s313 + $0x128] sm:$0xff] %v388
                  %v390 = vld [vmem:[%s312 + $0x260] sm:$0xff]
                  %391 = vst [vmem:[%s313 + $0x130] sm:$0xff] %v390
                  %v392 = vld [vmem:[%s312 + $0x270] sm:$0xff]
                  %393 = vst [vmem:[%s313 + $0x138] sm:$0xff] %v392
                  %v394 = vld [vmem:[%s312 + $0x280] sm:$0xff]
                  %395 = vst [vmem:[%s313 + $0x140] sm:$0xff] %v394
                  %v396 = vld [vmem:[%s312 + $0x290] sm:$0xff]
                  %397 = vst [vmem:[%s313 + $0x148] sm:$0xff] %v396
                  %v398 = vld [vmem:[%s312 + $0x2a0] sm:$0xff]
                  %399 = vst [vmem:[%s313 + $0x150] sm:$0xff] %v398
                  %v400 = vld [vmem:[%s312 + $0x2b0] sm:$0xff]
                  %401 = vst [vmem:[%s313 + $0x158] sm:$0xff] %v400
                  %v402 = vld [vmem:[%s312 + $0x2c0] sm:$0xff]
                  %403 = vst [vmem:[%s313 + $0x160] sm:$0xff] %v402
                  %v404 = vld [vmem:[%s312 + $0x2d0] sm:$0xff]
                  %405 = vst [vmem:[%s313 + $0x168] sm:$0xff] %v404
                  %v406 = vld [vmem:[%s312 + $0x2e0] sm:$0xff]
                  %407 = vst [vmem:[%s313 + $0x170] sm:$0xff] %v406
                  %v408 = vld [vmem:[%s312 + $0x2f0] sm:$0xff]
                  %409 = vst [vmem:[%s313 + $0x178] sm:$0xff] %v408
                $region56: #{convlstm_cell.1} parent=50 // loop_footer
                  %s311 = sadd.s32 1, %s307
                $region57: #{convlstm_cell.1} parent=50 // loop_footer_branch
                  %306 = sbr.rel target = $region53
                $region58: #{convlstm_cell.1} parent=50 // loop_exit
                  _
              $region51: #{convlstm_cell.1} parent=35 // pred_fallthru
                _
              // Predicated region
              $region59: #{convlstm_cell.1} parent=35 // pred_check
                _
              $region60: #{convlstm_cell.1} parent=35 // pred_check_branch
                %411 = sbr.rel target = $region62
              $region61: #{convlstm_cell.1} parent=35 // pred_region
                _
              $region62: #{convlstm_cell.1} parent=35 // pred_fallthru
                _
            $region36: #{convlstm_cell.1} parent=31 // pred_fallthru
              _
            // Predicated region
            $region37: #{convlstm_cell.1} parent=31 // pred_check
              _
            $region38: #{convlstm_cell.1} parent=31 // pred_check_branch
              %198 = sbr.rel target = $region40
            $region39: #{convlstm_cell.1} parent=31 // pred_region
              loop: start=0, step=1, limit=1
              $region41: #{convlstm_cell.1} parent=39 // loop_pre_header
                _
              $region42: #{convlstm_cell.1} parent=39 // loop_header
                %s201 = sphi 0, %s205
                %p202 = scmp.ge.s32.totalorder %s201, 1
                %s206 = sphi %s192, %s192
                %s207 = sphi %s189, %s189
              $region43: #{convlstm_cell.1} parent=39 // loop_header_branch
                %204 = sbr.rel (%p202) target = $region47
              $region44: #{convlstm_cell.1} parent=39 // loop_body
                %v208 = vld [vmem:[%s206] sm:$0xff]
                %209 = vst [vmem:[%s207] sm:$0xff] %v208
                %v210 = vld [vmem:[%s206 + $0x10] sm:$0xff]
                %211 = vst [vmem:[%s207 + $0x8] sm:$0xff] %v210
                %v212 = vld [vmem:[%s206 + $0x20] sm:$0xff]
                %213 = vst [vmem:[%s207 + $0x10] sm:$0xff] %v212
                %v214 = vld [vmem:[%s206 + $0x30] sm:$0xff]
                %215 = vst [vmem:[%s207 + $0x18] sm:$0xff] %v214
                %v216 = vld [vmem:[%s206 + $0x40] sm:$0xff]
                %217 = vst [vmem:[%s207 + $0x20] sm:$0xff] %v216
                %v218 = vld [vmem:[%s206 + $0x50] sm:$0xff]
                %219 = vst [vmem:[%s207 + $0x28] sm:$0xff] %v218
                %v220 = vld [vmem:[%s206 + $0x60] sm:$0xff]
                %221 = vst [vmem:[%s207 + $0x30] sm:$0xff] %v220
                %v222 = vld [vmem:[%s206 + $0x70] sm:$0xff]
                %223 = vst [vmem:[%s207 + $0x38] sm:$0xff] %v222
                %v224 = vld [vmem:[%s206 + $0x80] sm:$0xff]
                %225 = vst [vmem:[%s207 + $0x40] sm:$0xff] %v224
                %v226 = vld [vmem:[%s206 + $0x90] sm:$0xff]
                %227 = vst [vmem:[%s207 + $0x48] sm:$0xff] %v226
                %v228 = vld [vmem:[%s206 + $0xa0] sm:$0xff]
                %229 = vst [vmem:[%s207 + $0x50] sm:$0xff] %v228
                %v230 = vld [vmem:[%s206 + $0xb0] sm:$0xff]
                %231 = vst [vmem:[%s207 + $0x58] sm:$0xff] %v230
                %v232 = vld [vmem:[%s206 + $0xc0] sm:$0xff]
                %233 = vst [vmem:[%s207 + $0x60] sm:$0xff] %v232
                %v234 = vld [vmem:[%s206 + $0xd0] sm:$0xff]
                %235 = vst [vmem:[%s207 + $0x68] sm:$0xff] %v234
                %v236 = vld [vmem:[%s206 + $0xe0] sm:$0xff]
                %237 = vst [vmem:[%s207 + $0x70] sm:$0xff] %v236
                %v238 = vld [vmem:[%s206 + $0xf0] sm:$0xff]
                %239 = vst [vmem:[%s207 + $0x78] sm:$0xff] %v238
                %v240 = vld [vmem:[%s206 + $0x100] sm:$0xff]
                %241 = vst [vmem:[%s207 + $0x80] sm:$0xff] %v240
                %v242 = vld [vmem:[%s206 + $0x110] sm:$0xff]
                %243 = vst [vmem:[%s207 + $0x88] sm:$0xff] %v242
                %v244 = vld [vmem:[%s206 + $0x120] sm:$0xff]
                %245 = vst [vmem:[%s207 + $0x90] sm:$0xff] %v244
                %v246 = vld [vmem:[%s206 + $0x130] sm:$0xff]
                %247 = vst [vmem:[%s207 + $0x98] sm:$0xff] %v246
                %v248 = vld [vmem:[%s206 + $0x140] sm:$0xff]
                %249 = vst [vmem:[%s207 + $0xa0] sm:$0xff] %v248
                %v250 = vld [vmem:[%s206 + $0x150] sm:$0xff]
                %251 = vst [vmem:[%s207 + $0xa8] sm:$0xff] %v250
                %v252 = vld [vmem:[%s206 + $0x160] sm:$0xff]
                %253 = vst [vmem:[%s207 + $0xb0] sm:$0xff] %v252
                %v254 = vld [vmem:[%s206 + $0x170] sm:$0xff]
                %255 = vst [vmem:[%s207 + $0xb8] sm:$0xff] %v254
                %v256 = vld [vmem:[%s206 + $0x180] sm:$0xff]
                %257 = vst [vmem:[%s207 + $0xc0] sm:$0xff] %v256
                %v258 = vld [vmem:[%s206 + $0x190] sm:$0xff]
                %259 = vst [vmem:[%s207 + $0xc8] sm:$0xff] %v258
                %v260 = vld [vmem:[%s206 + $0x1a0] sm:$0xff]
                %261 = vst [vmem:[%s207 + $0xd0] sm:$0xff] %v260
                %v262 = vld [vmem:[%s206 + $0x1b0] sm:$0xff]
                %263 = vst [vmem:[%s207 + $0xd8] sm:$0xff] %v262
                %v264 = vld [vmem:[%s206 + $0x1c0] sm:$0xff]
                %265 = vst [vmem:[%s207 + $0xe0] sm:$0xff] %v264
                %v266 = vld [vmem:[%s206 + $0x1d0] sm:$0xff]
                %267 = vst [vmem:[%s207 + $0xe8] sm:$0xff] %v266
                %v268 = vld [vmem:[%s206 + $0x1e0] sm:$0xff]
                %269 = vst [vmem:[%s207 + $0xf0] sm:$0xff] %v268
                %v270 = vld [vmem:[%s206 + $0x1f0] sm:$0xff]
                %271 = vst [vmem:[%s207 + $0xf8] sm:$0xff] %v270
                %v272 = vld [vmem:[%s206 + $0x200] sm:$0xff]
                %273 = vst [vmem:[%s207 + $0x100] sm:$0xff] %v272
                %v274 = vld [vmem:[%s206 + $0x210] sm:$0xff]
                %275 = vst [vmem:[%s207 + $0x108] sm:$0xff] %v274
                %v276 = vld [vmem:[%s206 + $0x220] sm:$0xff]
                %277 = vst [vmem:[%s207 + $0x110] sm:$0xff] %v276
                %v278 = vld [vmem:[%s206 + $0x230] sm:$0xff]
                %279 = vst [vmem:[%s207 + $0x118] sm:$0xff] %v278
                %v280 = vld [vmem:[%s206 + $0x240] sm:$0xff]
                %281 = vst [vmem:[%s207 + $0x120] sm:$0xff] %v280
                %v282 = vld [vmem:[%s206 + $0x250] sm:$0xff]
                %283 = vst [vmem:[%s207 + $0x128] sm:$0xff] %v282
                %v284 = vld [vmem:[%s206 + $0x260] sm:$0xff]
                %285 = vst [vmem:[%s207 + $0x130] sm:$0xff] %v284
                %v286 = vld [vmem:[%s206 + $0x270] sm:$0xff]
                %287 = vst [vmem:[%s207 + $0x138] sm:$0xff] %v286
                %v288 = vld [vmem:[%s206 + $0x280] sm:$0xff]
                %289 = vst [vmem:[%s207 + $0x140] sm:$0xff] %v288
                %v290 = vld [vmem:[%s206 + $0x290] sm:$0xff]
                %291 = vst [vmem:[%s207 + $0x148] sm:$0xff] %v290
                %v292 = vld [vmem:[%s206 + $0x2a0] sm:$0xff]
                %293 = vst [vmem:[%s207 + $0x150] sm:$0xff] %v292
                %v294 = vld [vmem:[%s206 + $0x2b0] sm:$0xff]
                %295 = vst [vmem:[%s207 + $0x158] sm:$0xff] %v294
                %v296 = vld [vmem:[%s206 + $0x2c0] sm:$0xff]
                %297 = vst [vmem:[%s207 + $0x160] sm:$0xff] %v296
                %v298 = vld [vmem:[%s206 + $0x2d0] sm:$0xff]
                %299 = vst [vmem:[%s207 + $0x168] sm:$0xff] %v298
                %v300 = vld [vmem:[%s206 + $0x2e0] sm:$0xff]
                %301 = vst [vmem:[%s207 + $0x170] sm:$0xff] %v300
                %v302 = vld [vmem:[%s206 + $0x2f0] sm:$0xff]
                %303 = vst [vmem:[%s207 + $0x178] sm:$0xff] %v302
              $region45: #{convlstm_cell.1} parent=39 // loop_footer
                %s205 = sadd.s32 1, %s201
              $region46: #{convlstm_cell.1} parent=39 // loop_footer_branch
                %200 = sbr.rel target = $region42
              $region47: #{convlstm_cell.1} parent=39 // loop_exit
                _
            $region40: #{convlstm_cell.1} parent=31 // pred_fallthru
              _
          $region32: #{convlstm_cell.1} parent=27 // pred_fallthru
            _
          %412 = vnop
        $region28: #{convlstm_cell.1} parent=23 // pred_fallthru
          _
        // Predicated region
        $region63: #{convlstm_cell.1} parent=23 // pred_check
          %p413 = pneg %p100
        $region64: #{convlstm_cell.1} parent=23 // pred_check_branch
          %415 = sbr.rel (%p413) target = $region66
        $region65: #{convlstm_cell.1} parent=23 // pred_region
          %p416 = scmp.lt.s32.totalorder %s12, 1
          %s417 = scalar_select %p416, %s12, 1
          %s418 = smul.addr %s417, 8
          %s419 = smul.addr %s418, 8
          %s420 = scalar_lea.vmem %s3, %s419
        $region66: #{convlstm_cell.1} parent=23 // pred_fallthru
          _
      $region24: #{convlstm_cell.1} parent=5 // pred_fallthru
        _
      %p421 = scmp.le.s32.totalorder 1, %s12
      %p422 = scmp.lt.s32.totalorder %s12, 3
      %p423 = pnand %p421, %p422
      %p424 = pneg %p423
      // Predicated region
      $region67: #{convlstm_cell.1} parent=5 // pred_check
        _
      $region68: #{convlstm_cell.1} parent=5 // pred_check_branch
        %426 = sbr.rel (%p423) target = $region70
      $region69: #{convlstm_cell.1} parent=5 // pred_region
        %s427 = ssub.s32 %s12, 1
        %s428 = sand.u32 %s46, 1
        %s429 = sand.u32 %s46, 1
        %s430 = smul.addr %s429, 384
        %s431 = scalar_lea.vmem [#allocation2], %s430
        // Predicated region
        $region71: #{convlstm_cell.1} parent=69 // pred_check
          %p432 = pneg %p59
        $region72: #{convlstm_cell.1} parent=69 // pred_check_branch
          %434 = sbr.rel (%p432) target = $region74
        $region73: #{convlstm_cell.1} parent=69 // pred_region
          _
        $region74: #{convlstm_cell.1} parent=69 // pred_fallthru
          _
        %p435 = pneg %p33
        %p436 = pneg %p30
        %s437 = sand.u32 %s46, 1
        %s438 = sand.u32 %s46, 1
        %s439 = smul.addr %s438, 384
        %s440 = scalar_lea.vmem [#allocation2], %s439
        %p441 = pneg %p59
        %p442 = pneg %p56
        %p443 = pneg %p80
        %p444 = pneg %p77
        %p445 = scmp.lt.s32.totalorder %s17, 1
        %s446 = scalar_select %p445, %s17, 1
        %s447 = smul.addr %s446, 8
        %s448 = smul.addr %s447, 8
        %s449 = scalar_lea.vmem %s3, %s448
        %p450 = pneg %p106
        %p451 = pneg %p103
        %p452 = pneg %p132
        %p453 = pneg %p129
        %p454 = scmp.lt.s32.totalorder %s17, 1
        %s455 = scalar_select %p454, %s17, 1
        %s456 = smul.addr %s455, 8
        %s457 = smul.addr %s456, 4
        %s458 = scalar_lea.vmem %s4, %s457
        %p459 = pneg %p158
        %p460 = pneg %p155
        %p461 = scmp.lt.s32.totalorder %s17, 1
        %s462 = scalar_select %p461, %s17, 1
        %s463 = smul.addr %s462, 8
        %s464 = smul.addr %s463, 8
        %s465 = scalar_lea.vmem %s5, %s464
        %s466 = smul.u32 2, %s17
        %p467 = scmp.lt.s32.totalorder %s17, 1
        %s468 = scalar_select %p467, %s17, 1
        %s469 = smul.addr %s468, 8
        %s470 = smul.addr %s469, 8
        %s471 = scalar_lea.vmem %s3, %s470
        %p472 = scmp.lt.s32.totalorder %s17, 1
        %s473 = scalar_select %p472, %s17, 1
        %s474 = smul.addr %s473, 8
        %s475 = smul.addr %s474, 4
        %s476 = scalar_lea.vmem %s4, %s475
        %p477 = scmp.lt.s32.totalorder %s17, 1
        %s478 = scalar_select %p477, %s17, 1
        %s479 = smul.addr %s478, 8
        %s480 = smul.addr %s479, 8
        %s481 = scalar_lea.vmem %s5, %s480
        %v484 = vld [vmem:[%s0] sm:$0xff]
        %v485 = vld [vmem:[%s0 + $0x8] sm:$0xf]
        %v486 = vld [vmem:[%s0 + $0xc] sm:$0xff]
        %v487 = vld [vmem:[%s0 + $0x14] sm:$0xf]
        %v488 = vld [vmem:[%s0 + $0x18] sm:$0xff]
        %v489 = vld [vmem:[%s0 + $0x20] sm:$0xf]
        %v490 = vld [vmem:[%s0 + $0x24] sm:$0xff]
        %v491 = vld [vmem:[%s0 + $0x2c] sm:$0xf]
        %v492 = vld [vmem:[%s0 + $0x30] sm:$0xff]
        %v493 = vld [vmem:[%s0 + $0x38] sm:$0xf]
        %v494 = vld [vmem:[%s0 + $0x3c] sm:$0xff]
        %v495 = vld [vmem:[%s0 + $0x44] sm:$0xf]
        %v496 = vld [vmem:[%s0 + $0x48] sm:$0xff]
        %v497 = vld [vmem:[%s0 + $0x50] sm:$0xf]
        %v498 = vld [vmem:[%s0 + $0x54] sm:$0xff]
        %v499 = vld [vmem:[%s0 + $0x5c] sm:$0xf]
        %v500 = vld [vmem:[%s0 + $0x60] sm:$0xff]
        %v501 = vld [vmem:[%s0 + $0x68] sm:$0xf]
        %v502 = vld [vmem:[%s0 + $0x6c] sm:$0xff]
        %v503 = vld [vmem:[%s0 + $0x74] sm:$0xf]
        %v504 = vld [vmem:[%s0 + $0x78] sm:$0xff]
        %v505 = vld [vmem:[%s0 + $0x80] sm:$0xf]
        %v506 = vld [vmem:[%s0 + $0x84] sm:$0xff]
        %v507 = vld [vmem:[%s0 + $0x8c] sm:$0xf]
        %v508 = vld [vmem:[%s0 + $0x90] sm:$0xff]
        %v509 = vld [vmem:[%s0 + $0x98] sm:$0xf]
        %v510 = vld [vmem:[%s0 + $0x9c] sm:$0xff]
        %v511 = vld [vmem:[%s0 + $0xa4] sm:$0xf]
        %v512 = vld [vmem:[%s0 + $0xa8] sm:$0xff]
        %v513 = vld [vmem:[%s0 + $0xb0] sm:$0xf]
        %v514 = vld [vmem:[%s0 + $0xb4] sm:$0xff]
        %v515 = vld [vmem:[%s0 + $0xbc] sm:$0xf]
        %v516 = vld [vmem:[%s431] sm:$0xff]
        %v517 = vld [vmem:[%s431 + $0x8] sm:$0xff]
        %v518 = vld [vmem:[%s431 + $0x10] sm:$0xff]
        %v519 = vld [vmem:[%s431 + $0x18] sm:$0xff]
        %v520 = vld [vmem:[%s431 + $0x20] sm:$0xff]
        %v521 = vld [vmem:[%s431 + $0x28] sm:$0xff]
        %v522 = vld [vmem:[%s431 + $0x30] sm:$0xff]
        %v523 = vld [vmem:[%s431 + $0x38] sm:$0xff]
        %v524 = vld [vmem:[%s431 + $0x40] sm:$0xff]
        %v525 = vld [vmem:[%s431 + $0x48] sm:$0xff]
        %v526 = vld [vmem:[%s431 + $0x50] sm:$0xff]
        %v527 = vld [vmem:[%s431 + $0x58] sm:$0xff]
        %v528 = vld [vmem:[%s431 + $0x60] sm:$0xff]
        %v529 = vld [vmem:[%s431 + $0x68] sm:$0xff]
        %v530 = vld [vmem:[%s431 + $0x70] sm:$0xff]
        %v531 = vld [vmem:[%s431 + $0x78] sm:$0xff]
        %v532 = vld [vmem:[%s431 + $0x80] sm:$0xff]
        %v533 = vld [vmem:[%s431 + $0x88] sm:$0xff]
        %v534 = vld [vmem:[%s431 + $0x90] sm:$0xff]
        %v535 = vld [vmem:[%s431 + $0x98] sm:$0xff]
        %v536 = vld [vmem:[%s431 + $0xa0] sm:$0xff]
        %v537 = vld [vmem:[%s431 + $0xa8] sm:$0xff]
        %v538 = vld [vmem:[%s431 + $0xb0] sm:$0xff]
        %v539 = vld [vmem:[%s431 + $0xb8] sm:$0xff]
        %v540 = vld [vmem:[%s431 + $0xc0] sm:$0xff]
        %v541 = vld [vmem:[%s431 + $0xc8] sm:$0xff]
        %v542 = vld [vmem:[%s431 + $0xd0] sm:$0xff]
        %v543 = vld [vmem:[%s431 + $0xd8] sm:$0xff]
        %v544 = vld [vmem:[%s431 + $0xe0] sm:$0xff]
        %v545 = vld [vmem:[%s431 + $0xe8] sm:$0xff]
        %v546 = vld [vmem:[%s431 + $0xf0] sm:$0xff]
        %v547 = vld [vmem:[%s431 + $0xf8] sm:$0xff]
        %v548 = vld [vmem:[%s431 + $0x100] sm:$0xff]
        %v549 = vld [vmem:[%s431 + $0x108] sm:$0xff]
        %v550 = vld [vmem:[%s431 + $0x110] sm:$0xff]
        %v551 = vld [vmem:[%s431 + $0x118] sm:$0xff]
        %v552 = vld [vmem:[%s431 + $0x120] sm:$0xff]
        %v553 = vld [vmem:[%s431 + $0x128] sm:$0xff]
        %v554 = vld [vmem:[%s431 + $0x130] sm:$0xff]
        %v555 = vld [vmem:[%s431 + $0x138] sm:$0xff]
        %v556 = vld [vmem:[%s431 + $0x140] sm:$0xff]
        %v557 = vld [vmem:[%s431 + $0x148] sm:$0xff]
        %v558 = vld [vmem:[%s431 + $0x150] sm:$0xff]
        %v559 = vld [vmem:[%s431 + $0x158] sm:$0xff]
        %v560 = vld [vmem:[%s431 + $0x160] sm:$0xff]
        %v561 = vld [vmem:[%s431 + $0x168] sm:$0xff]
        %v562 = vld [vmem:[%s431 + $0x170] sm:$0xff]
        %v563 = vld [vmem:[%s431 + $0x178] sm:$0xff]
        %v564 = vld [vmem:[%s2] sm:$0xff]
        %v565 = vld [vmem:[%s2 + $0x8] sm:$0xff]
        %v566 = vld [vmem:[%s2 + $0x10] sm:$0xff]
        %v567 = vld [vmem:[%s2 + $0x18] sm:$0xff]
        %v568 = vld [vmem:[%s2 + $0x20] sm:$0xff]
        %v569 = vld [vmem:[%s2 + $0x28] sm:$0xff]
        %v570 = vld [vmem:[%s2 + $0x30] sm:$0xff]
        %v571 = vld [vmem:[%s2 + $0x38] sm:$0xff]
        %v572 = vld [vmem:[%s2 + $0x40] sm:$0xff]
        %v573 = vld [vmem:[%s2 + $0x48] sm:$0xff]
        %v574 = vld [vmem:[%s2 + $0x50] sm:$0xff]
        %v575 = vld [vmem:[%s2 + $0x58] sm:$0xff]
        %v576 = vld [vmem:[%s2 + $0x60] sm:$0xff]
        %v577 = vld [vmem:[%s2 + $0x68] sm:$0xff]
        %v578 = vld [vmem:[%s2 + $0x70] sm:$0xff]
        %v579 = vld [vmem:[%s2 + $0x78] sm:$0xff]
        %581 = vset.pattern.permute.xlu0 0
        %582 = vperm.xlu0 %581, %v564
        %v583 = vpop.permute.xlu0 %582
        %586 = vset.pattern.permute.xlu0 0
        %587 = vperm.xlu0 %586, %v565
        %v588 = vpop.permute.xlu0 %587
        %591 = vset.pattern.permute.xlu0 0
        %592 = vperm.xlu0 %591, %v566
        %v593 = vpop.permute.xlu0 %592
        %596 = vset.pattern.permute.xlu0 0
        %597 = vperm.xlu0 %596, %v567
        %v598 = vpop.permute.xlu0 %597
        %601 = vset.pattern.permute.xlu0 0
        %602 = vperm.xlu0 %601, %v568
        %v603 = vpop.permute.xlu0 %602
        %606 = vset.pattern.permute.xlu0 0
        %607 = vperm.xlu0 %606, %v569
        %v608 = vpop.permute.xlu0 %607
        %611 = vset.pattern.permute.xlu0 0
        %612 = vperm.xlu0 %611, %v570
        %v613 = vpop.permute.xlu0 %612
        %616 = vset.pattern.permute.xlu0 0
        %617 = vperm.xlu0 %616, %v571
        %v618 = vpop.permute.xlu0 %617
        %621 = vset.pattern.permute.xlu0 0
        %622 = vperm.xlu0 %621, %v572
        %v623 = vpop.permute.xlu0 %622
        %626 = vset.pattern.permute.xlu0 0
        %627 = vperm.xlu0 %626, %v573
        %v628 = vpop.permute.xlu0 %627
        %631 = vset.pattern.permute.xlu0 0
        %632 = vperm.xlu0 %631, %v574
        %v633 = vpop.permute.xlu0 %632
        %636 = vset.pattern.permute.xlu0 0
        %637 = vperm.xlu0 %636, %v575
        %v638 = vpop.permute.xlu0 %637
        %641 = vset.pattern.permute.xlu0 0
        %642 = vperm.xlu0 %641, %v576
        %v643 = vpop.permute.xlu0 %642
        %646 = vset.pattern.permute.xlu0 0
        %647 = vperm.xlu0 %646, %v577
        %v648 = vpop.permute.xlu0 %647
        %651 = vset.pattern.permute.xlu0 0
        %652 = vperm.xlu0 %651, %v578
        %v653 = vpop.permute.xlu0 %652
        %656 = vset.pattern.permute.xlu0 0
        %657 = vperm.xlu0 %656, %v579
        %v658 = vpop.permute.xlu0 %657
        %v692 = vunpack.c.l.b16 %v484
        %v693 = vunpack.c.h.b16 %v484
        %v694 = vunpack.c.l.b16 %v485
        %v695 = vunpack.c.l.b16 %v486
        %v696 = vunpack.c.h.b16 %v486
        %v697 = vunpack.c.l.b16 %v487
        %v698 = vunpack.c.l.b16 %v488
        %v699 = vunpack.c.h.b16 %v488
        %v700 = vunpack.c.l.b16 %v489
        %v701 = vunpack.c.l.b16 %v490
        %v702 = vunpack.c.h.b16 %v490
        %v703 = vunpack.c.l.b16 %v491
        %v704 = vunpack.c.l.b16 %v492
        %v705 = vunpack.c.h.b16 %v492
        %v706 = vunpack.c.l.b16 %v493
        %v707 = vunpack.c.l.b16 %v494
        %v708 = vunpack.c.h.b16 %v494
        %v709 = vunpack.c.l.b16 %v495
        %v710 = vunpack.c.l.b16 %v496
        %v711 = vunpack.c.h.b16 %v496
        %v712 = vunpack.c.l.b16 %v497
        %v713 = vunpack.c.l.b16 %v498
        %v714 = vunpack.c.h.b16 %v498
        %v715 = vunpack.c.l.b16 %v499
        %v716 = vunpack.c.l.b16 %v500
        %v717 = vunpack.c.h.b16 %v500
        %v718 = vunpack.c.l.b16 %v501
        %v719 = vunpack.c.l.b16 %v502
        %v720 = vunpack.c.h.b16 %v502
        %v721 = vunpack.c.l.b16 %v503
        %v722 = vunpack.c.l.b16 %v504
        %v723 = vunpack.c.h.b16 %v504
        %v724 = vunpack.c.l.b16 %v505
        %v725 = vunpack.c.l.b16 %v506
        %v726 = vunpack.c.h.b16 %v506
        %v727 = vunpack.c.l.b16 %v507
        %v728 = vunpack.c.l.b16 %v508
        %v729 = vunpack.c.h.b16 %v508
        %v730 = vunpack.c.l.b16 %v509
        %v731 = vunpack.c.l.b16 %v510
        %v732 = vunpack.c.h.b16 %v510
        %v733 = vunpack.c.l.b16 %v511
        %v734 = vunpack.c.l.b16 %v512
        %v735 = vunpack.c.h.b16 %v512
        %v736 = vunpack.c.l.b16 %v513
        %v737 = vunpack.c.l.b16 %v514
        %v738 = vunpack.c.h.b16 %v514
        %v739 = vunpack.c.l.b16 %v515
        %v740 = vpack.c.b16 %v695, %v692
        %v741 = vpack.c.b16 %v696, %v693
        %v742 = vpack.c.b16 %v697, %v694
        %v743 = vpack.c.b16 %v701, %v698
        %v744 = vpack.c.b16 %v702, %v699
        %v745 = vpack.c.b16 %v703, %v700
        %v746 = vpack.c.b16 %v707, %v704
        %v747 = vpack.c.b16 %v708, %v705
        %v748 = vpack.c.b16 %v709, %v706
        %v749 = vpack.c.b16 %v713, %v710
        %v750 = vpack.c.b16 %v714, %v711
        %v751 = vpack.c.b16 %v715, %v712
        %v752 = vpack.c.b16 %v719, %v716
        %v753 = vpack.c.b16 %v720, %v717
        %v754 = vpack.c.b16 %v721, %v718
        %v755 = vpack.c.b16 %v725, %v722
        %v756 = vpack.c.b16 %v726, %v723
        %v757 = vpack.c.b16 %v727, %v724
        %v758 = vpack.c.b16 %v731, %v728
        %v759 = vpack.c.b16 %v732, %v729
        %v760 = vpack.c.b16 %v733, %v730
        %v761 = vpack.c.b16 %v737, %v734
        %v762 = vpack.c.b16 %v738, %v735
        %v763 = vpack.c.b16 %v739, %v736
        %v836 = vunpack.c.l.b16 %v516
        %v837 = vunpack.c.h.b16 %v516
        %v838 = vunpack.c.l.b16 %v517
        %v839 = vunpack.c.h.b16 %v517
        %v840 = vunpack.c.l.b16 %v518
        %v841 = vunpack.c.h.b16 %v518
        %v842 = vunpack.c.l.b16 %v519
        %v843 = vunpack.c.h.b16 %v519
        %v844 = vunpack.c.l.b16 %v520
        %v845 = vunpack.c.h.b16 %v520
        %v846 = vunpack.c.l.b16 %v521
        %v847 = vunpack.c.h.b16 %v521
        %v848 = vunpack.c.l.b16 %v522
        %v849 = vunpack.c.h.b16 %v522
        %v850 = vunpack.c.l.b16 %v523
        %v851 = vunpack.c.h.b16 %v523
        %v852 = vunpack.c.l.b16 %v524
        %v853 = vunpack.c.h.b16 %v524
        %v854 = vunpack.c.l.b16 %v525
        %v855 = vunpack.c.h.b16 %v525
        %v856 = vunpack.c.l.b16 %v526
        %v857 = vunpack.c.h.b16 %v526
        %v858 = vunpack.c.l.b16 %v527
        %v859 = vunpack.c.h.b16 %v527
        %v860 = vunpack.c.l.b16 %v528
        %v861 = vunpack.c.h.b16 %v528
        %v862 = vunpack.c.l.b16 %v529
        %v863 = vunpack.c.h.b16 %v529
        %v864 = vunpack.c.l.b16 %v530
        %v865 = vunpack.c.h.b16 %v530
        %v866 = vunpack.c.l.b16 %v531
        %v867 = vunpack.c.h.b16 %v531
        %v868 = vunpack.c.l.b16 %v532
        %v869 = vunpack.c.h.b16 %v532
        %v870 = vunpack.c.l.b16 %v533
        %v871 = vunpack.c.h.b16 %v533
        %v872 = vunpack.c.l.b16 %v534
        %v873 = vunpack.c.h.b16 %v534
        %v874 = vunpack.c.l.b16 %v535
        %v875 = vunpack.c.h.b16 %v535
        %v876 = vunpack.c.l.b16 %v536
        %v877 = vunpack.c.h.b16 %v536
        %v878 = vunpack.c.l.b16 %v537
        %v879 = vunpack.c.h.b16 %v537
        %v880 = vunpack.c.l.b16 %v538
        %v881 = vunpack.c.h.b16 %v538
        %v882 = vunpack.c.l.b16 %v539
        %v883 = vunpack.c.h.b16 %v539
        %v884 = vunpack.c.l.b16 %v540
        %v885 = vunpack.c.h.b16 %v540
        %v886 = vunpack.c.l.b16 %v541
        %v887 = vunpack.c.h.b16 %v541
        %v888 = vunpack.c.l.b16 %v542
        %v889 = vunpack.c.h.b16 %v542
        %v890 = vunpack.c.l.b16 %v543
        %v891 = vunpack.c.h.b16 %v543
        %v892 = vunpack.c.l.b16 %v544
        %v893 = vunpack.c.h.b16 %v544
        %v894 = vunpack.c.l.b16 %v545
        %v895 = vunpack.c.h.b16 %v545
        %v896 = vunpack.c.l.b16 %v546
        %v897 = vunpack.c.h.b16 %v546
        %v898 = vunpack.c.l.b16 %v547
        %v899 = vunpack.c.h.b16 %v547
        %v900 = vunpack.c.l.b16 %v548
        %v901 = vunpack.c.h.b16 %v548
        %v902 = vunpack.c.l.b16 %v549
        %v903 = vunpack.c.h.b16 %v549
        %v904 = vunpack.c.l.b16 %v550
        %v905 = vunpack.c.h.b16 %v550
        %v906 = vunpack.c.l.b16 %v551
        %v907 = vunpack.c.h.b16 %v551
        %v908 = vunpack.c.l.b16 %v552
        %v909 = vunpack.c.h.b16 %v552
        %v910 = vunpack.c.l.b16 %v553
        %v911 = vunpack.c.h.b16 %v553
        %v912 = vunpack.c.l.b16 %v554
        %v913 = vunpack.c.h.b16 %v554
        %v914 = vunpack.c.l.b16 %v555
        %v915 = vunpack.c.h.b16 %v555
        %v916 = vunpack.c.l.b16 %v556
        %v917 = vunpack.c.h.b16 %v556
        %v918 = vunpack.c.l.b16 %v557
        %v919 = vunpack.c.h.b16 %v557
        %v920 = vunpack.c.l.b16 %v558
        %v921 = vunpack.c.h.b16 %v558
        %v922 = vunpack.c.l.b16 %v559
        %v923 = vunpack.c.h.b16 %v559
        %v924 = vunpack.c.l.b16 %v560
        %v925 = vunpack.c.h.b16 %v560
        %v926 = vunpack.c.l.b16 %v561
        %v927 = vunpack.c.h.b16 %v561
        %v928 = vunpack.c.l.b16 %v562
        %v929 = vunpack.c.h.b16 %v562
        %v930 = vunpack.c.l.b16 %v563
        %v931 = vunpack.c.h.b16 %v563
        %v932 = vpack.c.b16 %v838, %v836
        %v933 = vpack.c.b16 %v839, %v837
        %v934 = vpack.c.b16 %v842, %v840
        %v935 = vpack.c.b16 %v843, %v841
        %v936 = vpack.c.b16 %v846, %v844
        %v937 = vpack.c.b16 %v847, %v845
        %v938 = vpack.c.b16 %v850, %v848
        %v939 = vpack.c.b16 %v851, %v849
        %v940 = vpack.c.b16 %v854, %v852
        %v941 = vpack.c.b16 %v855, %v853
        %v942 = vpack.c.b16 %v858, %v856
        %v943 = vpack.c.b16 %v859, %v857
        %v944 = vpack.c.b16 %v862, %v860
        %v945 = vpack.c.b16 %v863, %v861
        %v946 = vpack.c.b16 %v866, %v864
        %v947 = vpack.c.b16 %v867, %v865
        %v948 = vpack.c.b16 %v870, %v868
        %v949 = vpack.c.b16 %v871, %v869
        %v950 = vpack.c.b16 %v874, %v872
        %v951 = vpack.c.b16 %v875, %v873
        %v952 = vpack.c.b16 %v878, %v876
        %v953 = vpack.c.b16 %v879, %v877
        %v954 = vpack.c.b16 %v882, %v880
        %v955 = vpack.c.b16 %v883, %v881
        %v956 = vpack.c.b16 %v886, %v884
        %v957 = vpack.c.b16 %v887, %v885
        %v958 = vpack.c.b16 %v890, %v888
        %v959 = vpack.c.b16 %v891, %v889
        %v960 = vpack.c.b16 %v894, %v892
        %v961 = vpack.c.b16 %v895, %v893
        %v962 = vpack.c.b16 %v898, %v896
        %v963 = vpack.c.b16 %v899, %v897
        %v964 = vpack.c.b16 %v902, %v900
        %v965 = vpack.c.b16 %v903, %v901
        %v966 = vpack.c.b16 %v906, %v904
        %v967 = vpack.c.b16 %v907, %v905
        %v968 = vpack.c.b16 %v910, %v908
        %v969 = vpack.c.b16 %v911, %v909
        %v970 = vpack.c.b16 %v914, %v912
        %v971 = vpack.c.b16 %v915, %v913
        %v972 = vpack.c.b16 %v918, %v916
        %v973 = vpack.c.b16 %v919, %v917
        %v974 = vpack.c.b16 %v922, %v920
        %v975 = vpack.c.b16 %v923, %v921
        %v976 = vpack.c.b16 %v926, %v924
        %v977 = vpack.c.b16 %v927, %v925
        %v978 = vpack.c.b16 %v930, %v928
        %v979 = vpack.c.b16 %v931, %v929
        %1028 = vmatprep.subr.bf16.mxu0 %v933
        %1029 = vmatpush1.bf16.msra.mxu0 %v932
        %1030 = vmatprep.subr.bf16.mxu0 %v935
        %1031 = vmatpush1.bf16.msra.mxu0 %v934
        %1032 = vmatprep.subr.bf16.mxu0 %v937
        %1033 = vmatpush1.bf16.msra.mxu0 %v936
        %1034 = vmatprep.subr.bf16.mxu0 %v939
        %1035 = vmatpush1.bf16.msra.mxu0 %v938
        %1036 = vmatprep.subr.bf16.mxu0 %v941
        %1037 = vmatpush1.bf16.msra.mxu0 %v940
        %1038 = vmatprep.subr.bf16.mxu0 %v943
        %1039 = vmatpush1.bf16.msra.mxu0 %v942
        %1040 = vmatprep.subr.bf16.mxu0 %v945
        %1041 = vmatpush1.bf16.msra.mxu0 %v944
        %1042 = vmatprep.subr.bf16.mxu0 %v947
        %1043 = vmatpush1.bf16.msra.mxu0 %v946
        %1044 = vmatprep.subr.bf16.mxu0 %v949
        %1045 = vmatpush1.bf16.msra.mxu0 %v948
        %1046 = vmatprep.subr.bf16.mxu0 %v951
        %1047 = vmatpush1.bf16.msra.mxu0 %v950
        %1048 = vmatprep.subr.bf16.mxu0 %v953
        %1049 = vmatpush1.bf16.msra.mxu0 %v952
        %1050 = vmatprep.subr.bf16.mxu0 %v955
        %1051 = vmatpush1.bf16.msra.mxu0 %v954
        %1052 = vmatprep.subr.bf16.mxu0 %v957
        %1053 = vmatpush1.bf16.msra.mxu0 %v956
        %1054 = vmatprep.subr.bf16.mxu0 %v959
        %1055 = vmatpush1.bf16.msra.mxu0 %v958
        %1056 = vmatprep.subr.bf16.mxu0 %v961
        %1057 = vmatpush1.bf16.msra.mxu0 %v960
        %1058 = vmatprep.subr.bf16.mxu0 %v963
        %1059 = vmatpush1.bf16.msra.mxu0 %v962
        %1060 = vmatprep.mubr.bf16.mxu0 %v741
        %1061 = vmatmul.mubr.bf16.gmra.mrb[0].mxu0 %v740
        %v1062 = vpop.f32.mrb[0].mxu0
        %v1063 = vadd.f32 %v583, %v1062
        %v1064 = vpop.f32.mrb[0].mxu0
        %v1065 = vadd.f32 %v583, %v1064
        %v1066 = vpop.f32.mrb[0].mxu0
        %v1067 = vadd.f32 %v588, %v1066
        %v1068 = vpop.f32.mrb[0].mxu0
        %v1069 = vadd.f32 %v588, %v1068
        %1070 = vmatprep.mubr.bf16.mxu0 %v744
        %1071 = vmatmul.mubr.bf16.gmra.mrb[0].mxu0 %v743
        %v1072 = vpop.f32.mrb[0].mxu0
        %v1073 = vadd.f32 %v593, %v1072
        %v1074 = vpop.f32.mrb[0].mxu0
        %v1075 = vadd.f32 %v593, %v1074
        %v1076 = vpop.f32.mrb[0].mxu0
        %v1077 = vadd.f32 %v598, %v1076
        %v1078 = vpop.f32.mrb[0].mxu0
        %v1079 = vadd.f32 %v598, %v1078
        %1080 = vmatprep.mubr.bf16.mxu0 %v747
        %1081 = vmatmul.mubr.bf16.gmra.mrb[0].mxu0 %v746
        %v1082 = vpop.f32.mrb[0].mxu0
        %v1083 = vadd.f32 %v603, %v1082
        %v1084 = vpop.f32.mrb[0].mxu0
        %v1085 = vadd.f32 %v603, %v1084
        %v1086 = vpop.f32.mrb[0].mxu0
        %v1087 = vadd.f32 %v608, %v1086
        %v1088 = vpop.f32.mrb[0].mxu0
        %v1089 = vadd.f32 %v608, %v1088
        %1090 = vmatprep.mubr.bf16.mxu0 %v750
        %1091 = vmatmul.mubr.bf16.gmra.mrb[0].mxu0 %v749
        %v1092 = vpop.f32.mrb[0].mxu0
        %v1093 = vadd.f32 %v613, %v1092
        %v1094 = vpop.f32.mrb[0].mxu0
        %v1095 = vadd.f32 %v613, %v1094
        %v1096 = vpop.f32.mrb[0].mxu0
        %v1097 = vadd.f32 %v618, %v1096
        %v1098 = vpop.f32.mrb[0].mxu0
        %v1099 = vadd.f32 %v618, %v1098
        %1100 = vmatprep.mubr.bf16.mxu0 %v753
        %1101 = vmatmul.mubr.bf16.gmra.mrb[0].mxu0 %v752
        %v1102 = vpop.f32.mrb[0].mxu0
        %v1103 = vadd.f32 %v623, %v1102
        %v1104 = vpop.f32.mrb[0].mxu0
        %v1105 = vadd.f32 %v623, %v1104
        %v1106 = vpop.f32.mrb[0].mxu0
        %v1107 = vadd.f32 %v628, %v1106
        %v1108 = vpop.f32.mrb[0].mxu0
        %v1109 = vadd.f32 %v628, %v1108
        %1110 = vmatprep.mubr.bf16.mxu0 %v756
        %1111 = vmatmul.mubr.bf16.gmra.mrb[0].mxu0 %v755
        %v1112 = vpop.f32.mrb[0].mxu0
        %v1113 = vadd.f32 %v633, %v1112
        %v1114 = vpop.f32.mrb[0].mxu0
        %v1115 = vadd.f32 %v633, %v1114
        %v1116 = vpop.f32.mrb[0].mxu0
        %v1117 = vadd.f32 %v638, %v1116
        %v1118 = vpop.f32.mrb[0].mxu0
        %v1119 = vadd.f32 %v638, %v1118
        %1120 = vmatprep.mubr.bf16.mxu0 %v759
        %1121 = vmatmul.mubr.bf16.gmra.mrb[0].mxu0 %v758
        %v1122 = vpop.f32.mrb[0].mxu0
        %v1123 = vadd.f32 %v643, %v1122
        %v1124 = vpop.f32.mrb[0].mxu0
        %v1125 = vadd.f32 %v643, %v1124
        %v1126 = vpop.f32.mrb[0].mxu0
        %v1127 = vadd.f32 %v648, %v1126
        %v1128 = vpop.f32.mrb[0].mxu0
        %v1129 = vadd.f32 %v648, %v1128
        %1130 = vmatprep.mubr.bf16.mxu0 %v762
        %1131 = vmatmul.mubr.bf16.gmra.mrb[0].mxu0 %v761
        %v1132 = vpop.f32.mrb[0].mxu0
        %v1133 = vadd.f32 %v653, %v1132
        %v1134 = vpop.f32.mrb[0].mxu0
        %v1135 = vadd.f32 %v653, %v1134
        %v1136 = vpop.f32.mrb[0].mxu0
        %v1137 = vadd.f32 %v658, %v1136
        %v1138 = vpop.f32.mrb[0].mxu0
        %v1139 = vadd.f32 %v658, %v1138
        %1140 = vdwg.mxu0
        %1141 = vmatprep.subr.bf16.mxu0 %v965
        %1142 = vmatpush1.bf16.msra.mxu0 %v964
        %1143 = vmatprep.subr.bf16.mxu0 %v967
        %1144 = vmatpush1.bf16.msra.mxu0 %v966
        %1145 = vmatprep.subr.bf16.mxu0 %v969
        %1146 = vmatpush1.bf16.msra.mxu0 %v968
        %1147 = vmatprep.subr.bf16.mxu0 %v971
        %1148 = vmatpush1.bf16.msra.mxu0 %v970
        %1149 = vmatprep.subr.bf16.mxu0 %v973
        %1150 = vmatpush1.bf16.msra.mxu0 %v972
        %1151 = vmatprep.subr.bf16.mxu0 %v975
        %1152 = vmatpush1.bf16.msra.mxu0 %v974
        %1153 = vmatprep.subr.bf16.mxu0 %v977
        %1154 = vmatpush1.bf16.msra.mxu0 %v976
        %1155 = vmatprep.subr.bf16.mxu0 %v979
        %1156 = vmatpush1.bf16.msra.mxu0 %v978
        %1157 = vmatprep.subr.bf16.mxu0 0
        %1158 = vmatpush1.bf16.msra.mxu0 0
        %1159 = vmatprep.subr.bf16.mxu0 0
        %1160 = vmatpush1.bf16.msra.mxu0 0
        %1161 = vmatprep.subr.bf16.mxu0 0
        %1162 = vmatpush1.bf16.msra.mxu0 0
        %1163 = vmatprep.subr.bf16.mxu0 0
        %1164 = vmatpush1.bf16.msra.mxu0 0
        %1165 = vmatprep.subr.bf16.mxu0 0
        %1166 = vmatpush1.bf16.msra.mxu0 0
        %1167 = vmatprep.subr.bf16.mxu0 0
        %1168 = vmatpush1.bf16.msra.mxu0 0
        %1169 = vmatprep.subr.bf16.mxu0 0
        %1170 = vmatpush1.bf16.msra.mxu0 0
        %1171 = vmatprep.subr.bf16.mxu0 0
        %1172 = vmatpush1.bf16.msra.mxu0 0
        %1173 = vmatprep.mubr.bf16.mxu0 0
        %1174 = vmatmul.mubr.bf16.gmra.mrb[0].mxu0 %v742
        %v1175 = vpop.f32.mrb[0].mxu0
        %v1176 = vadd.f32 %v1063, %v1175
        %v1177 = vpop.f32.mrb[0].mxu0
        %v1178 = vadd.f32 %v1065, %v1177
        %v1179 = vpop.f32.mrb[0].mxu0
        %v1180 = vadd.f32 %v1067, %v1179
        %v1181 = vpop.f32.mrb[0].mxu0
        %v1182 = vadd.f32 %v1069, %v1181
        %1183 = vmatprep.mubr.bf16.mxu0 0
        %1184 = vmatmul.mubr.bf16.gmra.mrb[0].mxu0 %v745
        %v1185 = vpop.f32.mrb[0].mxu0
        %v1186 = vadd.f32 %v1073, %v1185
        %v1187 = vpop.f32.mrb[0].mxu0
        %v1188 = vadd.f32 %v1075, %v1187
        %v1189 = vpop.f32.mrb[0].mxu0
        %v1190 = vadd.f32 %v1077, %v1189
        %v1191 = vpop.f32.mrb[0].mxu0
        %v1192 = vadd.f32 %v1079, %v1191
        %1193 = vmatprep.mubr.bf16.mxu0 0
        %1194 = vmatmul.mubr.bf16.gmra.mrb[0].mxu0 %v748
        %v1195 = vpop.f32.mrb[0].mxu0
        %v1196 = vadd.f32 %v1083, %v1195
        %v1197 = vpop.f32.mrb[0].mxu0
        %v1198 = vadd.f32 %v1085, %v1197
        %v1199 = vpop.f32.mrb[0].mxu0
        %v1200 = vadd.f32 %v1087, %v1199
        %v1201 = vpop.f32.mrb[0].mxu0
        %v1202 = vadd.f32 %v1089, %v1201
        %1203 = vmatprep.mubr.bf16.mxu0 0
        %1204 = vmatmul.mubr.bf16.gmra.mrb[0].mxu0 %v751
        %v1205 = vpop.f32.mrb[0].mxu0
        %v1206 = vadd.f32 %v1093, %v1205
        %v1207 = vpop.f32.mrb[0].mxu0
        %v1208 = vadd.f32 %v1095, %v1207
        %v1209 = vpop.f32.mrb[0].mxu0
        %v1210 = vadd.f32 %v1097, %v1209
        %v1211 = vpop.f32.mrb[0].mxu0
        %v1212 = vadd.f32 %v1099, %v1211
        %1213 = vmatprep.mubr.bf16.mxu0 0
        %1214 = vmatmul.mubr.bf16.gmra.mrb[0].mxu0 %v754
        %v1215 = vpop.f32.mrb[0].mxu0
        %v1216 = vadd.f32 %v1103, %v1215
        %v1217 = vpop.f32.mrb[0].mxu0
        %v1218 = vadd.f32 %v1105, %v1217
        %v1219 = vpop.f32.mrb[0].mxu0
        %v1220 = vadd.f32 %v1107, %v1219
        %v1221 = vpop.f32.mrb[0].mxu0
        %v1222 = vadd.f32 %v1109, %v1221
        %1223 = vmatprep.mubr.bf16.mxu0 0
        %1224 = vmatmul.mubr.bf16.gmra.mrb[0].mxu0 %v757
        %v1225 = vpop.f32.mrb[0].mxu0
        %v1226 = vadd.f32 %v1113, %v1225
        %v1227 = vpop.f32.mrb[0].mxu0
        %v1228 = vadd.f32 %v1115, %v1227
        %v1229 = vpop.f32.mrb[0].mxu0
        %v1230 = vadd.f32 %v1117, %v1229
        %v1231 = vpop.f32.mrb[0].mxu0
        %v1232 = vadd.f32 %v1119, %v1231
        %1233 = vmatprep.mubr.bf16.mxu0 0
        %1234 = vmatmul.mubr.bf16.gmra.mrb[0].mxu0 %v760
        %v1235 = vpop.f32.mrb[0].mxu0
        %v1236 = vadd.f32 %v1123, %v1235
        %v1237 = vpop.f32.mrb[0].mxu0
        %v1238 = vadd.f32 %v1125, %v1237
        %v1239 = vpop.f32.mrb[0].mxu0
        %v1240 = vadd.f32 %v1127, %v1239
        %v1241 = vpop.f32.mrb[0].mxu0
        %v1242 = vadd.f32 %v1129, %v1241
        %1243 = vmatprep.mubr.bf16.mxu0 0
        %1244 = vmatmul.mubr.bf16.gmra.mrb[0].mxu0 %v763
        %v1245 = vpop.f32.mrb[0].mxu0
        %v1246 = vadd.f32 %v1133, %v1245
        %v1247 = vpop.f32.mrb[0].mxu0
        %v1248 = vadd.f32 %v1135, %v1247
        %v1249 = vpop.f32.mrb[0].mxu0
        %v1250 = vadd.f32 %v1137, %v1249
        %v1251 = vpop.f32.mrb[0].mxu0
        %v1252 = vadd.f32 %v1139, %v1251
        %1253 = vdwg.mxu0
        %v1254 = vpack.c.bf16 %v1180, %v1176
        %v1255 = vpack.c.bf16 %v1182, %v1178
        %v1256 = vpack.c.bf16 %v1190, %v1186
        %v1257 = vpack.c.bf16 %v1192, %v1188
        %v1258 = vpack.c.bf16 %v1200, %v1196
        %v1259 = vpack.c.bf16 %v1202, %v1198
        %v1260 = vpack.c.bf16 %v1210, %v1206
        %v1261 = vpack.c.bf16 %v1212, %v1208
        %v1262 = vpack.c.bf16 %v1220, %v1216
        %v1263 = vpack.c.bf16 %v1222, %v1218
        %v1264 = vpack.c.bf16 %v1230, %v1226
        %v1265 = vpack.c.bf16 %v1232, %v1228
        %v1266 = vpack.c.bf16 %v1240, %v1236
        %v1267 = vpack.c.bf16 %v1242, %v1238
        %v1268 = vpack.c.bf16 %v1250, %v1246
        %v1269 = vpack.c.bf16 %v1252, %v1248
        %v1270 = vxor.u32 %v1254, 2147516416
        %v1271 = vxor.u32 %v1255, 2147516416
        %v1272 = vxor.u32 %v1256, 2147516416
        %v1273 = vxor.u32 %v1257, 2147516416
        %v1274 = vxor.u32 %v1258, 2147516416
        %v1275 = vxor.u32 %v1259, 2147516416
        %v1276 = vxor.u32 %v1260, 2147516416
        %v1277 = vxor.u32 %v1261, 2147516416
        %v1278 = vxor.u32 %v1262, 2147516416
        %v1279 = vxor.u32 %v1263, 2147516416
        %v1280 = vxor.u32 %v1264, 2147516416
        %v1281 = vxor.u32 %v1265, 2147516416
        %v1283 = vmul.bf16 %v1270, 1069105081
        %v1284 = vpow.bf16.pop %v1283
        %v1286 = vmul.bf16 %v1271, 1069105081
        %v1287 = vpow.bf16.pop %v1286
        %v1289 = vmul.bf16 %v1272, 1069105081
        %v1290 = vpow.bf16.pop %v1289
        %v1292 = vmul.bf16 %v1273, 1069105081
        %v1293 = vpow.bf16.pop %v1292
        %v1295 = vmul.bf16 %v1274, 1069105081
        %v1296 = vpow.bf16.pop %v1295
        %v1298 = vmul.bf16 %v1275, 1069105081
        %v1299 = vpow.bf16.pop %v1298
        %v1301 = vmul.bf16 %v1276, 1069105081
        %v1302 = vpow.bf16.pop %v1301
        %v1304 = vmul.bf16 %v1277, 1069105081
        %v1305 = vpow.bf16.pop %v1304
        %v1307 = vmul.bf16 %v1278, 1069105081
        %v1308 = vpow.bf16.pop %v1307
        %v1310 = vmul.bf16 %v1279, 1069105081
        %v1311 = vpow.bf16.pop %v1310
        %v1313 = vmul.bf16 %v1280, 1069105081
        %v1314 = vpow.bf16.pop %v1313
        %v1316 = vmul.bf16 %v1281, 1069105081
        %v1317 = vpow.bf16.pop %v1316
        %v1318 = vadd.bf16 %v1284, 1065369472
        %v1319 = vadd.bf16 %v1287, 1065369472
        %v1320 = vadd.bf16 %v1290, 1065369472
        %v1321 = vadd.bf16 %v1293, 1065369472
        %v1322 = vadd.bf16 %v1296, 1065369472
        %v1323 = vadd.bf16 %v1299, 1065369472
        %v1324 = vadd.bf16 %v1302, 1065369472
        %v1325 = vadd.bf16 %v1305, 1065369472
        %v1326 = vadd.bf16 %v1308, 1065369472
        %v1327 = vadd.bf16 %v1311, 1065369472
        %v1328 = vadd.bf16 %v1314, 1065369472
        %v1329 = vadd.bf16 %v1317, 1065369472
        %v1330 = vrcp.bf16.pop %v1318
        %v1331 = vmul.bf16 1065369472, %v1330
        %v1332 = vrcp.bf16.pop %v1319
        %v1333 = vmul.bf16 1065369472, %v1332
        %v1334 = vrcp.bf16.pop %v1320
        %v1335 = vmul.bf16 1065369472, %v1334
        %v1336 = vrcp.bf16.pop %v1321
        %v1337 = vmul.bf16 1065369472, %v1336
        %v1338 = vrcp.bf16.pop %v1322
        %v1339 = vmul.bf16 1065369472, %v1338
        %v1340 = vrcp.bf16.pop %v1323
        %v1341 = vmul.bf16 1065369472, %v1340
        %v1342 = vrcp.bf16.pop %v1324
        %v1343 = vmul.bf16 1065369472, %v1342
        %v1344 = vrcp.bf16.pop %v1325
        %v1345 = vmul.bf16 1065369472, %v1344
        %v1346 = vrcp.bf16.pop %v1326
        %v1347 = vmul.bf16 1065369472, %v1346
        %v1348 = vrcp.bf16.pop %v1327
        %v1349 = vmul.bf16 1065369472, %v1348
        %v1350 = vrcp.bf16.pop %v1328
        %v1351 = vmul.bf16 1065369472, %v1350
        %v1352 = vrcp.bf16.pop %v1329
        %v1353 = vmul.bf16 1065369472, %v1352
        %v1354 = vtanh.bf16.pop %v1266
        %v1355 = vtanh.bf16.pop %v1267
        %v1356 = vtanh.bf16.pop %v1268
        %v1357 = vtanh.bf16.pop %v1269
        %v1358 = vunpack.c.l.bf16 %v1354
        %v1359 = vunpack.c.l.bf16 %v1355
        %v1360 = vunpack.c.h.bf16 %v1354
        %v1361 = vunpack.c.h.bf16 %v1355
        %v1362 = vunpack.c.l.bf16 %v1356
        %v1363 = vunpack.c.l.bf16 %v1357
        %v1364 = vunpack.c.h.bf16 %v1356
        %v1365 = vunpack.c.h.bf16 %v1357
        %v1366 = vunpack.c.l.bf16 %v1331
        %v1367 = vunpack.c.l.bf16 %v1333
        %v1368 = vunpack.c.h.bf16 %v1331
        %v1369 = vunpack.c.h.bf16 %v1333
        %v1370 = vunpack.c.l.bf16 %v1335
        %v1371 = vunpack.c.l.bf16 %v1337
        %v1372 = vunpack.c.h.bf16 %v1335
        %v1373 = vunpack.c.h.bf16 %v1337
        %v1374 = vunpack.c.l.bf16 %v1339
        %v1375 = vunpack.c.l.bf16 %v1341
        %v1376 = vunpack.c.h.bf16 %v1339
        %v1377 = vunpack.c.h.bf16 %v1341
        %v1378 = vunpack.c.l.bf16 %v1343
        %v1379 = vunpack.c.l.bf16 %v1345
        %v1380 = vunpack.c.h.bf16 %v1343
        %v1381 = vunpack.c.h.bf16 %v1345
        %v1382 = vunpack.c.l.bf16 %v1347
        %v1383 = vunpack.c.l.bf16 %v1349
        %v1384 = vunpack.c.h.bf16 %v1347
        %v1385 = vunpack.c.h.bf16 %v1349
        %v1386 = vunpack.c.l.bf16 %v1351
        %v1387 = vunpack.c.l.bf16 %v1353
        %v1388 = vunpack.c.h.bf16 %v1351
        %v1389 = vunpack.c.h.bf16 %v1353
        %v1390 = vld [vmem:[%s471] sm:$0xff]
        %v1391 = vld [vmem:[%s471 + $0x8] sm:$0xff]
        %v1392 = vld [vmem:[%s471 + $0x10] sm:$0xff]
        %v1393 = vld [vmem:[%s471 + $0x18] sm:$0xff]
        %v1394 = vld [vmem:[%s471 + $0x20] sm:$0xff]
        %v1395 = vld [vmem:[%s471 + $0x28] sm:$0xff]
        %v1396 = vld [vmem:[%s471 + $0x30] sm:$0xff]
        %v1397 = vld [vmem:[%s471 + $0x38] sm:$0xff]
        %v1398 = vmul.f32 %v1374, %v1390
        %v1399 = vmul.f32 %v1375, %v1391
        %v1400 = vmul.f32 %v1376, %v1392
        %v1401 = vmul.f32 %v1377, %v1393
        %v1402 = vmul.f32 %v1378, %v1394
        %v1403 = vmul.f32 %v1379, %v1395
        %v1404 = vmul.f32 %v1380, %v1396
        %v1405 = vmul.f32 %v1381, %v1397
        %v1406 = vmul.f32 %v1366, %v1358
        %v1407 = vmul.f32 %v1367, %v1359
        %v1408 = vmul.f32 %v1368, %v1360
        %v1409 = vmul.f32 %v1369, %v1361
        %v1410 = vmul.f32 %v1370, %v1362
        %v1411 = vmul.f32 %v1371, %v1363
        %v1412 = vmul.f32 %v1372, %v1364
        %v1413 = vmul.f32 %v1373, %v1365
        %v1414 = vadd.f32 %v1398, %v1406
        %v1415 = vadd.f32 %v1399, %v1407
        %v1416 = vadd.f32 %v1400, %v1408
        %v1417 = vadd.f32 %v1401, %v1409
        %v1418 = vadd.f32 %v1402, %v1410
        %v1419 = vadd.f32 %v1403, %v1411
        %v1420 = vadd.f32 %v1404, %v1412
        %v1421 = vadd.f32 %v1405, %v1413
        %v1422 = vpack.c.bf16 %v1416, %v1414
        %v1423 = vpack.c.bf16 %v1417, %v1415
        %v1424 = vpack.c.bf16 %v1420, %v1418
        %v1425 = vpack.c.bf16 %v1421, %v1419
        %v1426 = vtanh.bf16.pop %v1422
        %v1427 = vtanh.bf16.pop %v1423
        %v1428 = vtanh.bf16.pop %v1424
        %v1429 = vtanh.bf16.pop %v1425
        %v1430 = vunpack.c.l.bf16 %v1426
        %v1431 = vunpack.c.l.bf16 %v1427
        %v1432 = vunpack.c.h.bf16 %v1426
        %v1433 = vunpack.c.h.bf16 %v1427
        %v1434 = vunpack.c.l.bf16 %v1428
        %v1435 = vunpack.c.l.bf16 %v1429
        %v1436 = vunpack.c.h.bf16 %v1428
        %v1437 = vunpack.c.h.bf16 %v1429
        %v1438 = vmul.f32 %v1382, %v1430
        %v1439 = vmul.f32 %v1383, %v1431
        %v1440 = vmul.f32 %v1384, %v1432
        %v1441 = vmul.f32 %v1385, %v1433
        %v1442 = vmul.f32 %v1386, %v1434
        %v1443 = vmul.f32 %v1387, %v1435
        %v1444 = vmul.f32 %v1388, %v1436
        %v1445 = vmul.f32 %v1389, %v1437
        %1446 = vst [vmem:[%s481] sm:$0xff] %v1414
        %1447 = vst [vmem:[%s481 + $0x8] sm:$0xff] %v1415
        %1448 = vst [vmem:[%s481 + $0x10] sm:$0xff] %v1416
        %1449 = vst [vmem:[%s481 + $0x18] sm:$0xff] %v1417
        %1450 = vst [vmem:[%s481 + $0x20] sm:$0xff] %v1418
        %1451 = vst [vmem:[%s481 + $0x28] sm:$0xff] %v1419
        %1452 = vst [vmem:[%s481 + $0x30] sm:$0xff] %v1420
        %1453 = vst [vmem:[%s481 + $0x38] sm:$0xff] %v1421
        %v1454 = vpack.c.bf16 %v1440, %v1438
        %v1455 = vpack.c.bf16 %v1441, %v1439
        %v1456 = vpack.c.bf16 %v1444, %v1442
        %v1457 = vpack.c.bf16 %v1445, %v1443
        %v1462 = vunpack.c.l.b16 %v1454
        %v1463 = vunpack.c.l.b16 %v1455
        %v1464 = vunpack.c.h.b16 %v1454
        %v1465 = vunpack.c.h.b16 %v1455
        %v1466 = vunpack.c.l.b16 %v1456
        %v1467 = vunpack.c.l.b16 %v1457
        %v1468 = vunpack.c.h.b16 %v1456
        %v1469 = vunpack.c.h.b16 %v1457
        %v1470 = vpack.c.b16 %v1463, %v1462
        %v1471 = vpack.c.b16 %v1465, %v1464
        %v1472 = vpack.c.b16 %v1467, %v1466
        %v1473 = vpack.c.b16 %v1469, %v1468
        %1478 = vst [vmem:[%s476] sm:$0xff] %v1470
        %1479 = vst [vmem:[%s476 + $0x8] sm:$0xff] %v1471
        %1480 = vst [vmem:[%s476 + $0x10] sm:$0xff] %v1472
        %1481 = vst [vmem:[%s476 + $0x18] sm:$0xff] %v1473
        %p1482 = scmp.lt.s32.totalorder %s17, 1
        %s1483 = scalar_select %p1482, %s17, 1
        %s1484 = smul.addr %s1483, 8
        %s1485 = smul.addr %s1484, 4
        %s1486 = scalar_lea.vmem %s4, %s1485
        %p1487 = scmp.lt.s32.totalorder %s17, 1
        %s1488 = scalar_select %p1487, %s17, 1
        %s1489 = smul.addr %s1488, 8
        %s1490 = smul.addr %s1489, 8
        %s1491 = scalar_lea.vmem %s5, %s1490
        // Predicated region
        $region75: #{convlstm_cell.1} parent=69 // pred_check
          %p1492 = pneg %p129
        $region76: #{convlstm_cell.1} parent=69 // pred_check_branch
          %1494 = sbr.rel (%p1492) target = $region78
        $region77: #{convlstm_cell.1} parent=69 // pred_region
          _
        $region78: #{convlstm_cell.1} parent=69 // pred_fallthru
          _
        // Predicated region
        $region79: #{convlstm_cell.1} parent=69 // pred_check
          %p1495 = pneg %p155
        $region80: #{convlstm_cell.1} parent=69 // pred_check_branch
          %1497 = sbr.rel (%p1495) target = $region82
        $region81: #{convlstm_cell.1} parent=69 // pred_region
          _
        $region82: #{convlstm_cell.1} parent=69 // pred_fallthru
          _
      $region70: #{convlstm_cell.1} parent=5 // pred_fallthru
        _
      %p1498 = scmp.le.s32.totalorder 2, %s12
      // Predicated region
      $region83: #{convlstm_cell.1} parent=5 // pred_check
        %p1499 = pneg %p1498
      $region84: #{convlstm_cell.1} parent=5 // pred_check_branch
        %1501 = sbr.rel (%p1499) target = $region86
      $region85: #{convlstm_cell.1} parent=5 // pred_region
        %s1502 = ssub.s32 %s12, 2
        // Predicated region
        $region87: #{convlstm_cell.1} parent=85 // pred_check
          %p1503 = pneg %p135
        $region88: #{convlstm_cell.1} parent=85 // pred_check_branch
          %1505 = sbr.rel (%p1503) target = $region90
        $region89: #{convlstm_cell.1} parent=85 // pred_region
          %p1506 = scmp.lt.s32.totalorder %s18, 1
          %s1507 = scalar_select %p1506, %s18, 1
          %s1508 = smul.addr %s1507, 8
          %s1509 = smul.addr %s1508, 4
          %s1510 = scalar_lea.vmem %s4, %s1509
        $region90: #{convlstm_cell.1} parent=85 // pred_fallthru
          _
        // Predicated region
        $region91: #{convlstm_cell.1} parent=85 // pred_check
          %p1511 = pneg %p161
        $region92: #{convlstm_cell.1} parent=85 // pred_check_branch
          %1513 = sbr.rel (%p1511) target = $region94
        $region93: #{convlstm_cell.1} parent=85 // pred_region
          %p1514 = scmp.lt.s32.totalorder %s18, 1
          %s1515 = scalar_select %p1514, %s18, 1
          %s1516 = smul.addr %s1515, 8
          %s1517 = smul.addr %s1516, 8
          %s1518 = scalar_lea.vmem %s5, %s1517
        $region94: #{convlstm_cell.1} parent=85 // pred_fallthru
          _
      $region86: #{convlstm_cell.1} parent=5 // pred_fallthru
        _
    $region6: #{convlstm_cell.1} parent=1 // loop_footer
      %s16 = sadd.s32 1, %s12
    $region7: #{convlstm_cell.1} parent=1 // loop_footer_branch
      %11 = sbr.rel target = $region3
    $region8: #{convlstm_cell.1} parent=1 // loop_exit
      _

</llo_original>
